<compile_context>
chip_gen: v6e
topology: v6e:2x2x1
jax: 0.10.0
libtpu: 0.0.40
codegen_flags: <defaults>
</compile_context>

<pallas_src>
import functools

import jax
import jax.numpy as jnp
from jax.experimental import pallas as pl
from jax.experimental.pallas import tpu as pltpu


def _round_up(x, m):
    return ((x + m - 1) // m) * m


def _gru_kernel(x_ref, wih_ref, whh_ref, bih_ref, bhh_ref, out_ref, *, T, B, HP):
    """Single-layer unidirectional GRU, time-major, fused gates, lane-padded H.

    x_ref:   (T*B, D)    time-major flattened inputs
    wih_ref: (D, 3*HP)   [W_ir | W_iz | W_in]^T, each gate zero-padded to HP lanes
    whh_ref: (HP, 3*HP)  [W_hr | W_hz | W_hn]^T, zero-padded rows & columns
    bih_ref: (1, 3*HP)   b_ih with b_hr / b_hz folded in, zero-padded
    bhh_ref: (1, 3*HP)   [0 | 0 | b_hn]  (b_hn stays inside r * (...)), zero-padded
    out_ref: (T*B, HP)   time-major flat outputs (padded lanes stay exactly 0)
    """
    x = x_ref[...]

    # Input projection for ALL timesteps and ALL three gates in one MXU matmul.
    # (T*B, 3*HP) f32 is a handful of vregs at these sizes -> keep it as a
    # value; no VMEM scratch, no masked scratch stores.
    gx = jnp.dot(x, wih_ref[...], preferred_element_type=jnp.float32) + bih_ref[...]

    # Recurrent weights / bias loaded once, reused every step.
    whh = whh_ref[...]
    bhh = bhh_ref[...]

    h = jnp.zeros((B, HP), jnp.float32)

    # T is small & static: a static Python loop == full unroll, so the LLO
    # scheduler can interleave MXU/EUP/VPU work across steps, and all gate
    # slices below are static, lane-aligned (multiples of HP) slices.
    # TODO(synk): for large T, chunk this loop (partial unroll) and pipeline
    # gx / out in T-chunks to bound code size, vreg pressure and VMEM.
    for t in range(T):
        gx_t = gx[t * B:(t + 1) * B, :]                     # (B, 3*HP), static slice
        # Single fused recurrent matmul per step: 1 MXU push instead of 3.
        gh = jnp.dot(h, whh, preferred_element_type=jnp.float32) + bhh
        r = jax.nn.sigmoid(gx_t[:, :HP] + gh[:, :HP])
        z = jax.nn.sigmoid(gx_t[:, HP:2 * HP] + gh[:, HP:2 * HP])
        n = jnp.tanh(gx_t[:, 2 * HP:] + r * gh[:, 2 * HP:])
        h = (1.0 - z) * n + z * h
        out_ref[t * B:(t + 1) * B, :] = h.astype(out_ref.dtype)


def prepare_gru_params(w_ih, w_hh, b_ih, b_hh):
    """One-time parameter prep, hoisted out of the per-call forward path.

    In:  PyTorch nn.GRU layout  w_ih (3H, D), w_hh (3H, H), b_ih (3H,), b_hh (3H,).
    Out: gate-concatenated, transposed, lane-padded operands for the kernel.
    Padded weight columns/rows AND padded bias lanes are zero, so padded hidden
    lanes stay exactly 0 through the GRU recurrence.
    """
    three_h, D = w_ih.shape
    H = three_h // 3
    HP = _round_up(H, 128)                      # lane-dense hidden dim

    pad_c = lambda a: jnp.pad(a, ((0, 0), (0, HP - H)))      # pad output columns
    pad_b = lambda v: jnp.pad(v, (0, HP - H))                # pad bias lanes

    wih_t = jnp.transpose(w_ih.reshape(3, H, D), (0, 2, 1))  # (3, D, H)
    whh_t = jnp.transpose(w_hh.reshape(3, H, H), (0, 2, 1))  # (3, H, H)
    wih_p = jnp.concatenate([pad_c(wih_t[g]) for g in range(3)], axis=1)  # (D, 3HP)
    whh_p = jnp.concatenate([pad_c(whh_t[g]) for g in range(3)], axis=1)  # (H, 3HP)
    whh_p = jnp.pad(whh_p, ((0, HP - H), (0, 0)))                         # (HP, 3HP)

    b_ih_g = b_ih.reshape(3, H)
    b_hh_g = b_hh.reshape(3, H)
    # Fold b_hr / b_hz into the input-projection bias (exactly equivalent for
    # the r and z gates); b_hn stays on the hidden path (inside r * (...)).
    bih_fold = b_ih_g + jnp.concatenate(
        [b_hh_g[:2], jnp.zeros((1, H), b_hh.dtype)], axis=0)
    bih_p = jnp.concatenate([pad_b(bih_fold[g]) for g in range(3)])[None, :]   # (1, 3HP)
    bhh_p = jnp.concatenate([jnp.zeros((2 * HP,), b_hh.dtype),
                             pad_b(b_hh_g[2])])[None, :]                       # (1, 3HP)

    return {"wih": wih_p, "whh": whh_p, "bih": bih_p, "bhh": bhh_p,
            "H": H, "HP": HP}


@functools.partial(jax.jit, static_argnames=("H", "HP"))
def _gru_apply(x_btd, wih, whh, bih, bhh, *, H, HP):
    """Per-call forward with pre-prepared parameters."""
    B, T, D = x_btd.shape
    x_flat = jnp.transpose(x_btd, (1, 0, 2)).reshape(T * B, D)   # time-major

    # Right-size the scoped VMEM limit (double-buffer headroom + slack).
    vmem_bytes = 4 * (T * B * D + D * 3 * HP + HP * 3 * HP + 2 * 3 * HP
                      + T * B * HP)
    vmem_limit = int(max(2 * vmem_bytes + (1 << 20), 4 << 20))

    kernel = functools.partial(_gru_kernel, T=T, B=B, HP=HP)
    out_flat = pl.pallas_call(
        kernel,
        out_shape=jax.ShapeDtypeStruct((T * B, HP), jnp.float32),
        in_specs=[pl.BlockSpec(memory_space=pltpu.MemorySpace.VMEM)] * 5,
        out_specs=pl.BlockSpec(memory_space=pltpu.MemorySpace.VMEM),
        compiler_params=pltpu.CompilerParams(vmem_limit_bytes=vmem_limit),
    )(x_flat, wih, whh, bih, bhh)

    out_tbh = out_flat[:, :H].reshape(T, B, H)
    output = jnp.transpose(out_tbh, (1, 0, 2))   # (B, T, H), batch_first
    h_n = out_tbh[-1][None]                      # (1, B, H) = (layers*dirs, B, H)
    return output, h_n


def gru_forward(x_btd, w_ih, w_hh, b_ih, b_hh):
    """Convenience wrapper taking raw PyTorch-layout weights.

    For repeated calls, do prepare_gru_params() once and call _gru_apply().
    """
    p = prepare_gru_params(w_ih, w_hh, b_ih, b_hh)
    return _gru_apply(x_btd, p["wih"], p["whh"], p["bih"], p["bhh"],
                      H=p["H"], HP=p["HP"])


def gru_reference(x, w_ih, w_hh, b_ih, b_hh):
    """Pure-JAX reference (same math as nn.GRU, batch_first)."""
    B, T, D = x.shape
    H = w_hh.shape[1]

    def step(h, xt):
        gx = xt @ w_ih.T + b_ih
        gh = h @ w_hh.T + b_hh
        r = jax.nn.sigmoid(gx[:, :H] + gh[:, :H])
        z = jax.nn.sigmoid(gx[:, H:2 * H] + gh[:, H:2 * H])
        n = jnp.tanh(gx[:, 2 * H:] + r * gh[:, 2 * H:])
        h_new = (1.0 - z) * n + z * h
        return h_new, h_new

    h0 = jnp.zeros((B, H), jnp.float32)
    hT, ys = jax.lax.scan(step, h0, jnp.transpose(x, (1, 0, 2)))
    return jnp.transpose(ys, (1, 0, 2)), hT[None]


def orthogonal(key, shape):
    """Deterministic (semi-)orthogonal init, mirroring torch.nn.init.orthogonal_."""
    rows, cols = shape
    flat = jax.random.normal(key, (max(rows, cols), min(rows, cols)), jnp.float32)
    q, r = jnp.linalg.qr(flat)
    s = jnp.sign(jnp.diagonal(r))
    s = jnp.where(s == 0, 1.0, s)      # avoid zeroing a column on exact-zero diag
    q = q * s[None, :]
    if rows < cols:
        q = q.T
    return q[:rows, :cols]


if __name__ == "__main__":
    # BaseRNN(rnn_type='gru', input_dim=32, rnn_dim=32, bidirectional=False,
    #         n_layer=1, drop_rate=0.0, orthogonal_init=True)
    B, T, D, H = 2, 8, 32, 32

    key = jax.random.PRNGKey(0)
    kx, k_wih, k_whh, k_bih, k_bhh = jax.random.split(key, 5)

    x = jax.random.normal(kx, (B, T, D), jnp.float32)

    # Parameters (PyTorch shapes); dim>1 weights get orthogonal init (init_weights()).
    w_ih = orthogonal(k_wih, (3 * H, D))
    w_hh = orthogonal(k_whh, (3 * H, H))
    bound = 1.0 / (H ** 0.5)
    b_ih = jax.random.uniform(k_bih, (3 * H,), jnp.float32, -bound, bound)
    b_hh = jax.random.uniform(k_bhh, (3 * H,), jnp.float32, -bound, bound)

    # One-time parameter prep (hoisted out of the per-call path), then apply.
    params = prepare_gru_params(w_ih, w_hh, b_ih, b_hh)
    out, h_n = _gru_apply(x, params["wih"], params["whh"], params["bih"],
                          params["bhh"], H=params["H"], HP=params["HP"])
    jax.block_until_ready((out, h_n))

    ref_out, ref_hn = gru_reference(x, w_ih, w_hh, b_ih, b_hh)
    assert out.shape == (B, T, H) and h_n.shape == (1, B, H)
    assert jnp.allclose(out, ref_out, atol=1e-4, rtol=1e-4)
    assert jnp.allclose(h_n, ref_hn, atol=1e-4, rtol=1e-4)

    print("KERNEL_OK")
</pallas_src>

<mosaic_0001>
module attributes {stable_mosaic.version = 11 : i64} {
  func.func @_gru_kernel(%arg0: memref<16x32xf32, #tpu.memory_space<vmem>>, %arg1: memref<32x384xf32, #tpu.memory_space<vmem>>, %arg2: memref<128x384xf32, #tpu.memory_space<vmem>>, %arg3: memref<1x384xf32, #tpu.memory_space<vmem>>, %arg4: memref<1x384xf32, #tpu.memory_space<vmem>>, %arg5: memref<16x128xf32, #tpu.memory_space<vmem>>) attributes {dimension_semantics = [], scalar_prefetch = 0 : i64, scratch_operands = 0 : i64, tpu.core_type = #tpu.core_type<tc>} {
    %c0 = arith.constant 0 : index
    %c0_0 = arith.constant 0 : index
    %0 = vector.load %arg0[%c0, %c0_0] : memref<16x32xf32, #tpu.memory_space<vmem>>, vector<16x32xf32>
    %c0_1 = arith.constant 0 : index
    %c0_2 = arith.constant 0 : index
    %1 = vector.load %arg1[%c0_1, %c0_2] : memref<32x384xf32, #tpu.memory_space<vmem>>, vector<32x384xf32>
    %cst = arith.constant dense<0.000000e+00> : vector<16x384xf32>
    %2 = tpu.matmul %0, %1, %cst {dimension_numbers = #tpu.dot_dimension_numbers<[1], [0], [0], [1], [0, 0, 1, 1], [], []>} : vector<16x32xf32>, vector<32x384xf32>, vector<16x384xf32> -> vector<16x384xf32>
    %c0_3 = arith.constant 0 : index
    %c0_4 = arith.constant 0 : index
    %3 = vector.load %arg3[%c0_3, %c0_4] : memref<1x384xf32, #tpu.memory_space<vmem>>, vector<1x384xf32>
    %4 = vector.broadcast %3 : vector<1x384xf32> to vector<16x384xf32>
    %5 = arith.addf %2, %4 : vector<16x384xf32>
    %c0_5 = arith.constant 0 : index
    %c0_6 = arith.constant 0 : index
    %6 = vector.load %arg2[%c0_5, %c0_6] : memref<128x384xf32, #tpu.memory_space<vmem>>, vector<128x384xf32>
    %c0_7 = arith.constant 0 : index
    %c0_8 = arith.constant 0 : index
    %7 = vector.load %arg4[%c0_7, %c0_8] : memref<1x384xf32, #tpu.memory_space<vmem>>, vector<1x384xf32>
    %cst_9 = arith.constant 0.000000e+00 : f32
    %8 = vector.broadcast %cst_9 : f32 to vector<2x128xf32>
    %9 = vector.extract_strided_slice %5 {offsets = [0, 0], sizes = [2, 384], strides = [1, 1]} : vector<16x384xf32> to vector<2x384xf32>
    %cst_10 = arith.constant dense<0.000000e+00> : vector<2x384xf32>
    %10 = tpu.matmul %8, %6, %cst_10 {dimension_numbers = #tpu.dot_dimension_numbers<[1], [0], [0], [1], [0, 0, 1, 1], [], []>} : vector<2x128xf32>, vector<128x384xf32>, vector<2x384xf32> -> vector<2x384xf32>
    %11 = vector.broadcast %7 : vector<1x384xf32> to vector<2x384xf32>
    %12 = arith.addf %10, %11 : vector<2x384xf32>
    %13 = vector.extract_strided_slice %9 {offsets = [0, 0], sizes = [2, 128], strides = [1, 1]} : vector<2x384xf32> to vector<2x128xf32>
    %14 = vector.extract_strided_slice %12 {offsets = [0, 0], sizes = [2, 128], strides = [1, 1]} : vector<2x384xf32> to vector<2x128xf32>
    %15 = arith.addf %13, %14 : vector<2x128xf32>
    %16 = arith.negf %15 : vector<2x128xf32>
    %17 = math.exp %16 : vector<2x128xf32>
    %cst_11 = arith.constant 1.000000e+00 : f32
    %18 = vector.broadcast %cst_11 : f32 to vector<2x128xf32>
    %19 = arith.addf %18, %17 : vector<2x128xf32>
    %20 = arith.divf %18, %19 : vector<2x128xf32>
    %21 = vector.extract_strided_slice %9 {offsets = [0, 128], sizes = [2, 128], strides = [1, 1]} : vector<2x384xf32> to vector<2x128xf32>
    %22 = vector.extract_strided_slice %12 {offsets = [0, 128], sizes = [2, 128], strides = [1, 1]} : vector<2x384xf32> to vector<2x128xf32>
    %23 = arith.addf %21, %22 : vector<2x128xf32>
    %24 = arith.negf %23 : vector<2x128xf32>
    %25 = math.exp %24 : vector<2x128xf32>
    %cst_12 = arith.constant 1.000000e+00 : f32
    %26 = vector.broadcast %cst_12 : f32 to vector<2x128xf32>
    %27 = arith.addf %26, %25 : vector<2x128xf32>
    %28 = arith.divf %26, %27 : vector<2x128xf32>
    %29 = vector.extract_strided_slice %9 {offsets = [0, 256], sizes = [2, 128], strides = [1, 1]} : vector<2x384xf32> to vector<2x128xf32>
    %30 = vector.extract_strided_slice %12 {offsets = [0, 256], sizes = [2, 128], strides = [1, 1]} : vector<2x384xf32> to vector<2x128xf32>
    %31 = arith.mulf %20, %30 : vector<2x128xf32>
    %32 = arith.addf %29, %31 : vector<2x128xf32>
    %33 = math.tanh %32 : vector<2x128xf32>
    %cst_13 = arith.constant 1.000000e+00 : f32
    %34 = vector.broadcast %cst_13 : f32 to vector<2x128xf32>
    %35 = arith.subf %34, %28 : vector<2x128xf32>
    %36 = arith.mulf %35, %33 : vector<2x128xf32>
    %37 = arith.mulf %28, %8 : vector<2x128xf32>
    %38 = arith.addf %36, %37 : vector<2x128xf32>
    %c0_14 = arith.constant 0 : index
    %c0_15 = arith.constant 0 : index
    %39 = vector.load %arg5[%c0_14, %c0_15] : memref<16x128xf32, #tpu.memory_space<vmem>>, vector<2x128xf32>
    tpu.vector_store %arg5[%c0_14, %c0_15], %38 {strides = array<i32>} : memref<16x128xf32, #tpu.memory_space<vmem>>, vector<2x128xf32>,
    %40 = vector.extract_strided_slice %5 {offsets = [2, 0], sizes = [2, 384], strides = [1, 1]} : vector<16x384xf32> to vector<2x384xf32>
    %cst_16 = arith.constant dense<0.000000e+00> : vector<2x384xf32>
    %41 = tpu.matmul %38, %6, %cst_16 {dimension_numbers = #tpu.dot_dimension_numbers<[1], [0], [0], [1], [0, 0, 1, 1], [], []>} : vector<2x128xf32>, vector<128x384xf32>, vector<2x384xf32> -> vector<2x384xf32>
    %42 = vector.broadcast %7 : vector<1x384xf32> to vector<2x384xf32>
    %43 = arith.addf %41, %42 : vector<2x384xf32>
    %44 = vector.extract_strided_slice %40 {offsets = [0, 0], sizes = [2, 128], strides = [1, 1]} : vector<2x384xf32> to vector<2x128xf32>
    %45 = vector.extract_strided_slice %43 {offsets = [0, 0], sizes = [2, 128], strides = [1, 1]} : vector<2x384xf32> to vector<2x128xf32>
    %46 = arith.addf %44, %45 : vector<2x128xf32>
    %47 = arith.negf %46 : vector<2x128xf32>
    %48 = math.exp %47 : vector<2x128xf32>
    %cst_17 = arith.constant 1.000000e+00 : f32
    %49 = vector.broadcast %cst_17 : f32 to vector<2x128xf32>
    %50 = arith.addf %49, %48 : vector<2x128xf32>
    %51 = arith.divf %49, %50 : vector<2x128xf32>
    %52 = vector.extract_strided_slice %40 {offsets = [0, 128], sizes = [2, 128], strides = [1, 1]} : vector<2x384xf32> to vector<2x128xf32>
    %53 = vector.extract_strided_slice %43 {offsets = [0, 128], sizes = [2, 128], strides = [1, 1]} : vector<2x384xf32> to vector<2x128xf32>
    %54 = arith.addf %52, %53 : vector<2x128xf32>
    %55 = arith.negf %54 : vector<2x128xf32>
    %56 = math.exp %55 : vector<2x128xf32>
    %cst_18 = arith.constant 1.000000e+00 : f32
    %57 = vector.broadcast %cst_18 : f32 to vector<2x128xf32>
    %58 = arith.addf %57, %56 : vector<2x128xf32>
    %59 = arith.divf %57, %58 : vector<2x128xf32>
    %60 = vector.extract_strided_slice %40 {offsets = [0, 256], sizes = [2, 128], strides = [1, 1]} : vector<2x384xf32> to vector<2x128xf32>
    %61 = vector.extract_strided_slice %43 {offsets = [0, 256], sizes = [2, 128], strides = [1, 1]} : vector<2x384xf32> to vector<2x128xf32>
    %62 = arith.mulf %51, %61 : vector<2x128xf32>
    %63 = arith.addf %60, %62 : vector<2x128xf32>
    %64 = math.tanh %63 : vector<2x128xf32>
    %cst_19 = arith.constant 1.000000e+00 : f32
    %65 = vector.broadcast %cst_19 : f32 to vector<2x128xf32>
    %66 = arith.subf %65, %59 : vector<2x128xf32>
    %67 = arith.mulf %66, %64 : vector<2x128xf32>
    %68 = arith.mulf %59, %38 : vector<2x128xf32>
    %69 = arith.addf %67, %68 : vector<2x128xf32>
    %c2 = arith.constant 2 : index
    %c0_20 = arith.constant 0 : index
    %70 = vector.load %arg5[%c2, %c0_20] : memref<16x128xf32, #tpu.memory_space<vmem>>, vector<2x128xf32>
    tpu.vector_store %arg5[%c2, %c0_20], %69 {strides = array<i32>} : memref<16x128xf32, #tpu.memory_space<vmem>>, vector<2x128xf32>,
    %71 = vector.extract_strided_slice %5 {offsets = [4, 0], sizes = [2, 384], strides = [1, 1]} : vector<16x384xf32> to vector<2x384xf32>
    %cst_21 = arith.constant dense<0.000000e+00> : vector<2x384xf32>
    %72 = tpu.matmul %69, %6, %cst_21 {dimension_numbers = #tpu.dot_dimension_numbers<[1], [0], [0], [1], [0, 0, 1, 1], [], []>} : vector<2x128xf32>, vector<128x384xf32>, vector<2x384xf32> -> vector<2x384xf32>
    %73 = vector.broadcast %7 : vector<1x384xf32> to vector<2x384xf32>
    %74 = arith.addf %72, %73 : vector<2x384xf32>
    %75 = vector.extract_strided_slice %71 {offsets = [0, 0], sizes = [2, 128], strides = [1, 1]} : vector<2x384xf32> to vector<2x128xf32>
    %76 = vector.extract_strided_slice %74 {offsets = [0, 0], sizes = [2, 128], strides = [1, 1]} : vector<2x384xf32> to vector<2x128xf32>
    %77 = arith.addf %75, %76 : vector<2x128xf32>
    %78 = arith.negf %77 : vector<2x128xf32>
    %79 = math.exp %78 : vector<2x128xf32>
    %cst_22 = arith.constant 1.000000e+00 : f32
    %80 = vector.broadcast %cst_22 : f32 to vector<2x128xf32>
    %81 = arith.addf %80, %79 : vector<2x128xf32>
    %82 = arith.divf %80, %81 : vector<2x128xf32>
    %83 = vector.extract_strided_slice %71 {offsets = [0, 128], sizes = [2, 128], strides = [1, 1]} : vector<2x384xf32> to vector<2x128xf32>
    %84 = vector.extract_strided_slice %74 {offsets = [0, 128], sizes = [2, 128], strides = [1, 1]} : vector<2x384xf32> to vector<2x128xf32>
    %85 = arith.addf %83, %84 : vector<2x128xf32>
    %86 = arith.negf %85 : vector<2x128xf32>
    %87 = math.exp %86 : vector<2x128xf32>
    %cst_23 = arith.constant 1.000000e+00 : f32
    %88 = vector.broadcast %cst_23 : f32 to vector<2x128xf32>
    %89 = arith.addf %88, %87 : vector<2x128xf32>
    %90 = arith.divf %88, %89 : vector<2x128xf32>
    %91 = vector.extract_strided_slice %71 {offsets = [0, 256], sizes = [2, 128], strides = [1, 1]} : vector<2x384xf32> to vector<2x128xf32>
    %92 = vector.extract_strided_slice %74 {offsets = [0, 256], sizes = [2, 128], strides = [1, 1]} : vector<2x384xf32> to vector<2x128xf32>
    %93 = arith.mulf %82, %92 : vector<2x128xf32>
    %94 = arith.addf %91, %93 : vector<2x128xf32>
    %95 = math.tanh %94 : vector<2x128xf32>
    %cst_24 = arith.constant 1.000000e+00 : f32
    %96 = vector.broadcast %cst_24 : f32 to vector<2x128xf32>
    %97 = arith.subf %96, %90 : vector<2x128xf32>
    %98 = arith.mulf %97, %95 : vector<2x128xf32>
    %99 = arith.mulf %90, %69 : vector<2x128xf32>
    %100 = arith.addf %98, %99 : vector<2x128xf32>
    %c4 = arith.constant 4 : index
    %c0_25 = arith.constant 0 : index
    %101 = vector.load %arg5[%c4, %c0_25] : memref<16x128xf32, #tpu.memory_space<vmem>>, vector<2x128xf32>
    tpu.vector_store %arg5[%c4, %c0_25], %100 {strides = array<i32>} : memref<16x128xf32, #tpu.memory_space<vmem>>, vector<2x128xf32>,
    %102 = vector.extract_strided_slice %5 {offsets = [6, 0], sizes = [2, 384], strides = [1, 1]} : vector<16x384xf32> to vector<2x384xf32>
    %cst_26 = arith.constant dense<0.000000e+00> : vector<2x384xf32>
    %103 = tpu.matmul %100, %6, %cst_26 {dimension_numbers = #tpu.dot_dimension_numbers<[1], [0], [0], [1], [0, 0, 1, 1], [], []>} : vector<2x128xf32>, vector<128x384xf32>, vector<2x384xf32> -> vector<2x384xf32>
    %104 = vector.broadcast %7 : vector<1x384xf32> to vector<2x384xf32>
    %105 = arith.addf %103, %104 : vector<2x384xf32>
    %106 = vector.extract_strided_slice %102 {offsets = [0, 0], sizes = [2, 128], strides = [1, 1]} : vector<2x384xf32> to vector<2x128xf32>
    %107 = vector.extract_strided_slice %105 {offsets = [0, 0], sizes = [2, 128], strides = [1, 1]} : vector<2x384xf32> to vector<2x128xf32>
    %108 = arith.addf %106, %107 : vector<2x128xf32>
    %109 = arith.negf %108 : vector<2x128xf32>
    %110 = math.exp %109 : vector<2x128xf32>
    %cst_27 = arith.constant 1.000000e+00 : f32
    %111 = vector.broadcast %cst_27 : f32 to vector<2x128xf32>
    %112 = arith.addf %111, %110 : vector<2x128xf32>
    %113 = arith.divf %111, %112 : vector<2x128xf32>
    %114 = vector.extract_strided_slice %102 {offsets = [0, 128], sizes = [2, 128], strides = [1, 1]} : vector<2x384xf32> to vector<2x128xf32>
    %115 = vector.extract_strided_slice %105 {offsets = [0, 128], sizes = [2, 128], strides = [1, 1]} : vector<2x384xf32> to vector<2x128xf32>
    %116 = arith.addf %114, %115 : vector<2x128xf32>
    %117 = arith.negf %116 : vector<2x128xf32>
    %118 = math.exp %117 : vector<2x128xf32>
    %cst_28 = arith.constant 1.000000e+00 : f32
    %119 = vector.broadcast %cst_28 : f32 to vector<2x128xf32>
    %120 = arith.addf %119, %118 : vector<2x128xf32>
    %121 = arith.divf %119, %120 : vector<2x128xf32>
    %122 = vector.extract_strided_slice %102 {offsets = [0, 256], sizes = [2, 128], strides = [1, 1]} : vector<2x384xf32> to vector<2x128xf32>
    %123 = vector.extract_strided_slice %105 {offsets = [0, 256], sizes = [2, 128], strides = [1, 1]} : vector<2x384xf32> to vector<2x128xf32>
    %124 = arith.mulf %113, %123 : vector<2x128xf32>
    %125 = arith.addf %122, %124 : vector<2x128xf32>
    %126 = math.tanh %125 : vector<2x128xf32>
    %cst_29 = arith.constant 1.000000e+00 : f32
    %127 = vector.broadcast %cst_29 : f32 to vector<2x128xf32>
    %128 = arith.subf %127, %121 : vector<2x128xf32>
    %129 = arith.mulf %128, %126 : vector<2x128xf32>
    %130 = arith.mulf %121, %100 : vector<2x128xf32>
    %131 = arith.addf %129, %130 : vector<2x128xf32>
    %c6 = arith.constant 6 : index
    %c0_30 = arith.constant 0 : index
    %132 = vector.load %arg5[%c6, %c0_30] : memref<16x128xf32, #tpu.memory_space<vmem>>, vector<2x128xf32>
    tpu.vector_store %arg5[%c6, %c0_30], %131 {strides = array<i32>} : memref<16x128xf32, #tpu.memory_space<vmem>>, vector<2x128xf32>,
    %133 = vector.extract_strided_slice %5 {offsets = [8, 0], sizes = [2, 384], strides = [1, 1]} : vector<16x384xf32> to vector<2x384xf32>
    %cst_31 = arith.constant dense<0.000000e+00> : vector<2x384xf32>
    %134 = tpu.matmul %131, %6, %cst_31 {dimension_numbers = #tpu.dot_dimension_numbers<[1], [0], [0], [1], [0, 0, 1, 1], [], []>} : vector<2x128xf32>, vector<128x384xf32>, vector<2x384xf32> -> vector<2x384xf32>
    %135 = vector.broadcast %7 : vector<1x384xf32> to vector<2x384xf32>
    %136 = arith.addf %134, %135 : vector<2x384xf32>
    %137 = vector.extract_strided_slice %133 {offsets = [0, 0], sizes = [2, 128], strides = [1, 1]} : vector<2x384xf32> to vector<2x128xf32>
    %138 = vector.extract_strided_slice %136 {offsets = [0, 0], sizes = [2, 128], strides = [1, 1]} : vector<2x384xf32> to vector<2x128xf32>
    %139 = arith.addf %137, %138 : vector<2x128xf32>
    %140 = arith.negf %139 : vector<2x128xf32>
    %141 = math.exp %140 : vector<2x128xf32>
    %cst_32 = arith.constant 1.000000e+00 : f32
    %142 = vector.broadcast %cst_32 : f32 to vector<2x128xf32>
    %143 = arith.addf %142, %141 : vector<2x128xf32>
    %144 = arith.divf %142, %143 : vector<2x128xf32>
    %145 = vector.extract_strided_slice %133 {offsets = [0, 128], sizes = [2, 128], strides = [1, 1]} : vector<2x384xf32> to vector<2x128xf32>
    %146 = vector.extract_strided_slice %136 {offsets = [0, 128], sizes = [2, 128], strides = [1, 1]} : vector<2x384xf32> to vector<2x128xf32>
    %147 = arith.addf %145, %146 : vector<2x128xf32>
    %148 = arith.negf %147 : vector<2x128xf32>
    %149 = math.exp %148 : vector<2x128xf32>
    %cst_33 = arith.constant 1.000000e+00 : f32
    %150 = vector.broadcast %cst_33 : f32 to vector<2x128xf32>
    %151 = arith.addf %150, %149 : vector<2x128xf32>
    %152 = arith.divf %150, %151 : vector<2x128xf32>
    %153 = vector.extract_strided_slice %133 {offsets = [0, 256], sizes = [2, 128], strides = [1, 1]} : vector<2x384xf32> to vector<2x128xf32>
    %154 = vector.extract_strided_slice %136 {offsets = [0, 256], sizes = [2, 128], strides = [1, 1]} : vector<2x384xf32> to vector<2x128xf32>
    %155 = arith.mulf %144, %154 : vector<2x128xf32>
    %156 = arith.addf %153, %155 : vector<2x128xf32>
    %157 = math.tanh %156 : vector<2x128xf32>
    %cst_34 = arith.constant 1.000000e+00 : f32
    %158 = vector.broadcast %cst_34 : f32 to vector<2x128xf32>
    %159 = arith.subf %158, %152 : vector<2x128xf32>
    %160 = arith.mulf %159, %157 : vector<2x128xf32>
    %161 = arith.mulf %152, %131 : vector<2x128xf32>
    %162 = arith.addf %160, %161 : vector<2x128xf32>
    %c8 = arith.constant 8 : index
    %c0_35 = arith.constant 0 : index
    %163 = vector.load %arg5[%c8, %c0_35] : memref<16x128xf32, #tpu.memory_space<vmem>>, vector<2x128xf32>
    tpu.vector_store %arg5[%c8, %c0_35], %162 {strides = array<i32>} : memref<16x128xf32, #tpu.memory_space<vmem>>, vector<2x128xf32>,
    %164 = vector.extract_strided_slice %5 {offsets = [10, 0], sizes = [2, 384], strides = [1, 1]} : vector<16x384xf32> to vector<2x384xf32>
    %cst_36 = arith.constant dense<0.000000e+00> : vector<2x384xf32>
    %165 = tpu.matmul %162, %6, %cst_36 {dimension_numbers = #tpu.dot_dimension_numbers<[1], [0], [0], [1], [0, 0, 1, 1], [], []>} : vector<2x128xf32>, vector<128x384xf32>, vector<2x384xf32> -> vector<2x384xf32>
    %166 = vector.broadcast %7 : vector<1x384xf32> to vector<2x384xf32>
    %167 = arith.addf %165, %166 : vector<2x384xf32>
    %168 = vector.extract_strided_slice %164 {offsets = [0, 0], sizes = [2, 128], strides = [1, 1]} : vector<2x384xf32> to vector<2x128xf32>
    %169 = vector.extract_strided_slice %167 {offsets = [0, 0], sizes = [2, 128], strides = [1, 1]} : vector<2x384xf32> to vector<2x128xf32>
    %170 = arith.addf %168, %169 : vector<2x128xf32>
    %171 = arith.negf %170 : vector<2x128xf32>
    %172 = math.exp %171 : vector<2x128xf32>
    %cst_37 = arith.constant 1.000000e+00 : f32
    %173 = vector.broadcast %cst_37 : f32 to vector<2x128xf32>
    %174 = arith.addf %173, %172 : vector<2x128xf32>
    %175 = arith.divf %173, %174 : vector<2x128xf32>
    %176 = vector.extract_strided_slice %164 {offsets = [0, 128], sizes = [2, 128], strides = [1, 1]} : vector<2x384xf32> to vector<2x128xf32>
    %177 = vector.extract_strided_slice %167 {offsets = [0, 128], sizes = [2, 128], strides = [1, 1]} : vector<2x384xf32> to vector<2x128xf32>
    %178 = arith.addf %176, %177 : vector<2x128xf32>
    %179 = arith.negf %178 : vector<2x128xf32>
    %180 = math.exp %179 : vector<2x128xf32>
    %cst_38 = arith.constant 1.000000e+00 : f32
    %181 = vector.broadcast %cst_38 : f32 to vector<2x128xf32>
    %182 = arith.addf %181, %180 : vector<2x128xf32>
    %183 = arith.divf %181, %182 : vector<2x128xf32>
    %184 = vector.extract_strided_slice %164 {offsets = [0, 256], sizes = [2, 128], strides = [1, 1]} : vector<2x384xf32> to vector<2x128xf32>
    %185 = vector.extract_strided_slice %167 {offsets = [0, 256], sizes = [2, 128], strides = [1, 1]} : vector<2x384xf32> to vector<2x128xf32>
    %186 = arith.mulf %175, %185 : vector<2x128xf32>
    %187 = arith.addf %184, %186 : vector<2x128xf32>
    %188 = math.tanh %187 : vector<2x128xf32>
    %cst_39 = arith.constant 1.000000e+00 : f32
    %189 = vector.broadcast %cst_39 : f32 to vector<2x128xf32>
    %190 = arith.subf %189, %183 : vector<2x128xf32>
    %191 = arith.mulf %190, %188 : vector<2x128xf32>
    %192 = arith.mulf %183, %162 : vector<2x128xf32>
    %193 = arith.addf %191, %192 : vector<2x128xf32>
    %c10 = arith.constant 10 : index
    %c0_40 = arith.constant 0 : index
    %194 = vector.load %arg5[%c10, %c0_40] : memref<16x128xf32, #tpu.memory_space<vmem>>, vector<2x128xf32>
    tpu.vector_store %arg5[%c10, %c0_40], %193 {strides = array<i32>} : memref<16x128xf32, #tpu.memory_space<vmem>>, vector<2x128xf32>,
    %195 = vector.extract_strided_slice %5 {offsets = [12, 0], sizes = [2, 384], strides = [1, 1]} : vector<16x384xf32> to vector<2x384xf32>
    %cst_41 = arith.constant dense<0.000000e+00> : vector<2x384xf32>
    %196 = tpu.matmul %193, %6, %cst_41 {dimension_numbers = #tpu.dot_dimension_numbers<[1], [0], [0], [1], [0, 0, 1, 1], [], []>} : vector<2x128xf32>, vector<128x384xf32>, vector<2x384xf32> -> vector<2x384xf32>
    %197 = vector.broadcast %7 : vector<1x384xf32> to vector<2x384xf32>
    %198 = arith.addf %196, %197 : vector<2x384xf32>
    %199 = vector.extract_strided_slice %195 {offsets = [0, 0], sizes = [2, 128], strides = [1, 1]} : vector<2x384xf32> to vector<2x128xf32>
    %200 = vector.extract_strided_slice %198 {offsets = [0, 0], sizes = [2, 128], strides = [1, 1]} : vector<2x384xf32> to vector<2x128xf32>
    %201 = arith.addf %199, %200 : vector<2x128xf32>
    %202 = arith.negf %201 : vector<2x128xf32>
    %203 = math.exp %202 : vector<2x128xf32>
    %cst_42 = arith.constant 1.000000e+00 : f32
    %204 = vector.broadcast %cst_42 : f32 to vector<2x128xf32>
    %205 = arith.addf %204, %203 : vector<2x128xf32>
    %206 = arith.divf %204, %205 : vector<2x128xf32>
    %207 = vector.extract_strided_slice %195 {offsets = [0, 128], sizes = [2, 128], strides = [1, 1]} : vector<2x384xf32> to vector<2x128xf32>
    %208 = vector.extract_strided_slice %198 {offsets = [0, 128], sizes = [2, 128], strides = [1, 1]} : vector<2x384xf32> to vector<2x128xf32>
    %209 = arith.addf %207, %208 : vector<2x128xf32>
    %210 = arith.negf %209 : vector<2x128xf32>
    %211 = math.exp %210 : vector<2x128xf32>
    %cst_43 = arith.constant 1.000000e+00 : f32
    %212 = vector.broadcast %cst_43 : f32 to vector<2x128xf32>
    %213 = arith.addf %212, %211 : vector<2x128xf32>
    %214 = arith.divf %212, %213 : vector<2x128xf32>
    %215 = vector.extract_strided_slice %195 {offsets = [0, 256], sizes = [2, 128], strides = [1, 1]} : vector<2x384xf32> to vector<2x128xf32>
    %216 = vector.extract_strided_slice %198 {offsets = [0, 256], sizes = [2, 128], strides = [1, 1]} : vector<2x384xf32> to vector<2x128xf32>
    %217 = arith.mulf %206, %216 : vector<2x128xf32>
    %218 = arith.addf %215, %217 : vector<2x128xf32>
    %219 = math.tanh %218 : vector<2x128xf32>
    %cst_44 = arith.constant 1.000000e+00 : f32
    %220 = vector.broadcast %cst_44 : f32 to vector<2x128xf32>
    %221 = arith.subf %220, %214 : vector<2x128xf32>
    %222 = arith.mulf %221, %219 : vector<2x128xf32>
    %223 = arith.mulf %214, %193 : vector<2x128xf32>
    %224 = arith.addf %222, %223 : vector<2x128xf32>
    %c12 = arith.constant 12 : index
    %c0_45 = arith.constant 0 : index
    %225 = vector.load %arg5[%c12, %c0_45] : memref<16x128xf32, #tpu.memory_space<vmem>>, vector<2x128xf32>
    tpu.vector_store %arg5[%c12, %c0_45], %224 {strides = array<i32>} : memref<16x128xf32, #tpu.memory_space<vmem>>, vector<2x128xf32>,
    %226 = vector.extract_strided_slice %5 {offsets = [14, 0], sizes = [2, 384], strides = [1, 1]} : vector<16x384xf32> to vector<2x384xf32>
    %cst_46 = arith.constant dense<0.000000e+00> : vector<2x384xf32>
    %227 = tpu.matmul %224, %6, %cst_46 {dimension_numbers = #tpu.dot_dimension_numbers<[1], [0], [0], [1], [0, 0, 1, 1], [], []>} : vector<2x128xf32>, vector<128x384xf32>, vector<2x384xf32> -> vector<2x384xf32>
    %228 = vector.broadcast %7 : vector<1x384xf32> to vector<2x384xf32>
    %229 = arith.addf %227, %228 : vector<2x384xf32>
    %230 = vector.extract_strided_slice %226 {offsets = [0, 0], sizes = [2, 128], strides = [1, 1]} : vector<2x384xf32> to vector<2x128xf32>
    %231 = vector.extract_strided_slice %229 {offsets = [0, 0], sizes = [2, 128], strides = [1, 1]} : vector<2x384xf32> to vector<2x128xf32>
    %232 = arith.addf %230, %231 : vector<2x128xf32>
    %233 = arith.negf %232 : vector<2x128xf32>
    %234 = math.exp %233 : vector<2x128xf32>
    %cst_47 = arith.constant 1.000000e+00 : f32
    %235 = vector.broadcast %cst_47 : f32 to vector<2x128xf32>
    %236 = arith.addf %235, %234 : vector<2x128xf32>
    %237 = arith.divf %235, %236 : vector<2x128xf32>
    %238 = vector.extract_strided_slice %226 {offsets = [0, 128], sizes = [2, 128], strides = [1, 1]} : vector<2x384xf32> to vector<2x128xf32>
    %239 = vector.extract_strided_slice %229 {offsets = [0, 128], sizes = [2, 128], strides = [1, 1]} : vector<2x384xf32> to vector<2x128xf32>
    %240 = arith.addf %238, %239 : vector<2x128xf32>
    %241 = arith.negf %240 : vector<2x128xf32>
    %242 = math.exp %241 : vector<2x128xf32>
    %cst_48 = arith.constant 1.000000e+00 : f32
    %243 = vector.broadcast %cst_48 : f32 to vector<2x128xf32>
    %244 = arith.addf %243, %242 : vector<2x128xf32>
    %245 = arith.divf %243, %244 : vector<2x128xf32>
    %246 = vector.extract_strided_slice %226 {offsets = [0, 256], sizes = [2, 128], strides = [1, 1]} : vector<2x384xf32> to vector<2x128xf32>
    %247 = vector.extract_strided_slice %229 {offsets = [0, 256], sizes = [2, 128], strides = [1, 1]} : vector<2x384xf32> to vector<2x128xf32>
    %248 = arith.mulf %237, %247 : vector<2x128xf32>
    %249 = arith.addf %246, %248 : vector<2x128xf32>
    %250 = math.tanh %249 : vector<2x128xf32>
    %cst_49 = arith.constant 1.000000e+00 : f32
    %251 = vector.broadcast %cst_49 : f32 to vector<2x128xf32>
    %252 = arith.subf %251, %245 : vector<2x128xf32>
    %253 = arith.mulf %252, %250 : vector<2x128xf32>
    %254 = arith.mulf %245, %224 : vector<2x128xf32>
    %255 = arith.addf %253, %254 : vector<2x128xf32>
    %c14 = arith.constant 14 : index
    %c0_50 = arith.constant 0 : index
    %256 = vector.load %arg5[%c14, %c0_50] : memref<16x128xf32, #tpu.memory_space<vmem>>, vector<2x128xf32>
    tpu.vector_store %arg5[%c14, %c0_50], %255 {strides = array<i32>} : memref<16x128xf32, #tpu.memory_space<vmem>>, vector<2x128xf32>,
    return
  }
}

</mosaic_0001>

<llo_original>
// kernel: _gru_apply.1
$region0: #{_gru_apply.1}
  #allocation0 [shape = 'u32[]', space=smem, size = 0x4, offset = 0x4, fixed_abs, tag = 'smem constant byte address 0x4 - core index']
  #allocation1 [shape = 'u32[144,128]{1,0:T(1,128)}', space=vmem, size = 0x12000, scoped, tag = 'internal scratch']
  %s0 = inlined_call_operand.vmem [shape: f32[16,32], index: 0, kind: input, shape index: {}]
  %s1 = inlined_call_operand.hbm [shape: f32[32,384], index: 1, kind: input, shape index: {}]
  %s2 = inlined_call_operand.hbm [shape: f32[128,384], index: 2, kind: input, shape index: {}]
  %s3 = inlined_call_operand.vmem [shape: f32[1,384], index: 3, kind: input, shape index: {}]
  %s4 = inlined_call_operand.vmem [shape: f32[1,384], index: 4, kind: input, shape index: {}]
  %s5 = inlined_call_operand.vmem [shape: f32[16,128], index: 5, kind: output, shape index: {}]
  %s6 = sld [smem:[#allocation0]]
  $region38: #{_gru_apply.1} parent=0
    _
  %s8 = ssub.s32 1, %s6
  %s9 = scalar_select 0, %s8, %s6
  $region1: #{_gru_apply.1} parent=0
    #allocation2 [shape = 'u8[49152]{0}', space=vmem, size = 0xc000, scoped, tag = 'input window, operand 1, single buffered']
    #allocation3 [shape = 's32[1]{0}', space=sflag, size = 0x4, scoped, tag = 'scoped memory for _gru_apply.1']
    #allocation4 [shape = 'u8[196608]{0}', space=vmem, size = 0x30000, scoped, tag = 'input window, operand 2, single buffered']
    #allocation5 [shape = 's32[1]{0}', space=sflag, size = 0x4, scoped, tag = 'scoped memory for _gru_apply.1']
    %10 = vsyncpa [#allocation3], 0
    %11 = vsyncpa [#allocation5], 0
    // Predicated region
    $region2: #{_gru_apply.1} parent=1 // pred_check
      _
    $region3: #{_gru_apply.1} parent=1 // pred_check_branch
      %13 = sbr.rel (0) target = $region5
    $region4: #{_gru_apply.1} parent=1 // pred_region
      _
    $region5: #{_gru_apply.1} parent=1 // pred_fallthru
      _
    // Predicated region
    $region6: #{_gru_apply.1} parent=1 // pred_check
      _
    $region7: #{_gru_apply.1} parent=1 // pred_check_branch
      %15 = sbr.rel (0) target = $region9
    $region8: #{_gru_apply.1} parent=1 // pred_region
      %s17 = ssub.s32 1536, 1536
      %18 = vsyncadd [#allocation3], %s17
      %s19 = sshll.u32 [#allocation2], 4
      %s20 = int_to_ptr.vmem [resolvable:$true] %s19
      %25 = dma.hbm_to_vmem [thread:$0]  %s1, 1536, %s20, [#allocation3], 384, 384, 24
    $region9: #{_gru_apply.1} parent=1 // pred_fallthru
      _
    // Predicated region
    $region10: #{_gru_apply.1} parent=1 // pred_check
      _
    $region11: #{_gru_apply.1} parent=1 // pred_check_branch
      %27 = sbr.rel (0) target = $region13
    $region12: #{_gru_apply.1} parent=1 // pred_region
      %s29 = ssub.s32 6144, 6144
      %30 = vsyncadd [#allocation5], %s29
      %s31 = sshll.u32 [#allocation4], 4
      %s32 = int_to_ptr.vmem [resolvable:$true] %s31
      %37 = dma.hbm_to_vmem [thread:$0]  %s2, 6144, %s32, [#allocation5], 384, 384, 24
    $region13: #{_gru_apply.1} parent=1 // pred_fallthru
      _
    // Predicated region
    $region14: #{_gru_apply.1} parent=1 // pred_check
      _
    $region15: #{_gru_apply.1} parent=1 // pred_check_branch
      %39 = sbr.rel (0) target = $region17
    $region16: #{_gru_apply.1} parent=1 // pred_region
      _
    $region17: #{_gru_apply.1} parent=1 // pred_fallthru
      _
    // Predicated region
    $region18: #{_gru_apply.1} parent=1 // pred_check
      _
    $region19: #{_gru_apply.1} parent=1 // pred_check_branch
      %41 = sbr.rel (0) target = $region21
    $region20: #{_gru_apply.1} parent=1 // pred_region
      _
    $region21: #{_gru_apply.1} parent=1 // pred_fallthru
      _
    // Predicated region
    $region22: #{_gru_apply.1} parent=1 // pred_check
      _
    $region23: #{_gru_apply.1} parent=1 // pred_check_branch
      %43 = sbr.rel (0) target = $region25
    $region24: #{_gru_apply.1} parent=1 // pred_region
      %44 = dma.done [#allocation3], 1536
    $region25: #{_gru_apply.1} parent=1 // pred_fallthru
      _
    // Predicated region
    $region26: #{_gru_apply.1} parent=1 // pred_check
      _
    $region27: #{_gru_apply.1} parent=1 // pred_check_branch
      %46 = sbr.rel (0) target = $region29
    $region28: #{_gru_apply.1} parent=1 // pred_region
      %47 = dma.done [#allocation5], 6144
    $region29: #{_gru_apply.1} parent=1 // pred_fallthru
      _
    %v48 = vld [vmem:[%s0] sm:$0xff]
    %v49 = vld [vmem:[%s0 + $0x8] sm:$0xff]
    %v50 = vld [vmem:[#allocation2] sm:$0xff]
    %v51 = vld [vmem:[#allocation2 + $0x8] sm:$0xff]
    %v52 = vld [vmem:[#allocation2 + $0x10] sm:$0xff]
    %v53 = vld [vmem:[#allocation2 + $0x18] sm:$0xff]
    %v54 = vld [vmem:[#allocation2 + $0x20] sm:$0xff]
    %v55 = vld [vmem:[#allocation2 + $0x28] sm:$0xff]
    %v56 = vld [vmem:[#allocation2 + $0x30] sm:$0xff]
    %v57 = vld [vmem:[#allocation2 + $0x38] sm:$0xff]
    %v58 = vld [vmem:[#allocation2 + $0x40] sm:$0xff]
    %v59 = vld [vmem:[#allocation2 + $0x48] sm:$0xff]
    %v60 = vld [vmem:[#allocation2 + $0x50] sm:$0xff]
    %v61 = vld [vmem:[#allocation2 + $0x58] sm:$0xff]
    %v62 = vld [vmem:[%s3] sm:$0x7]
    %v64 = vlaneseq
    %v65 = vshrl.u32 %v64, 7
    %v66 = vsub.s32 0, %v65
    %v67 = vrot.slane %v62, %v66
    %v68 = vlaneseq
    %v69 = vshrl.u32 %v68, 7
    %v70 = vsub.s32 1, %v69
    %v71 = vrot.slane %v62, %v70
    %v72 = vlaneseq
    %v73 = vshrl.u32 %v72, 7
    %v74 = vsub.s32 2, %v73
    %v75 = vrot.slane %v62, %v74
    %vm79 = vcmask 261120
    %v81 = vsel %vm79, %v48, 0
    %v84 = vsel %vm79, %v49, 0
    %86 = vmatprep.subr.mxu0 0.0
    %87 = vmatpush1.msra.mxu0 0.0
    %88 = vmatprep.subr.mxu0 0.0
    %89 = vmatpush1.msra.mxu0 0.0
    %90 = vmatprep.subr.mxu0 0.0
    %91 = vmatpush1.msra.mxu0 0.0
    %92 = vmatprep.subr.mxu0 0.0
    %93 = vmatpush1.msra.mxu0 0.0
    %94 = vmatprep.subr.mxu0 0.0
    %95 = vmatpush1.msra.mxu0 0.0
    %96 = vmatprep.subr.mxu0 0.0
    %97 = vmatpush1.msra.mxu0 0.0
    %98 = vmatprep.subr.mxu0 0.0
    %99 = vmatpush1.msra.mxu0 0.0
    %100 = vmatprep.subr.mxu0 0.0
    %101 = vmatpush1.msra.mxu0 0.0
    %102 = vmatprep.subr.mxu0 0.0
    %103 = vmatpush1.msra.mxu0 0.0
    %104 = vmatprep.subr.mxu0 0.0
    %105 = vmatpush1.msra.mxu0 0.0
    %106 = vmatprep.subr.mxu0 0.0
    %107 = vmatpush1.msra.mxu0 0.0
    %108 = vmatprep.subr.mxu0 0.0
    %109 = vmatpush1.msra.mxu0 0.0
    %110 = vmatprep.subr.mxu0 %v60
    %111 = vmatpush1.msra.mxu0 %v59
    %112 = vmatprep.subr.mxu0 %v57
    %113 = vmatpush1.msra.mxu0 %v56
    %114 = vmatprep.subr.mxu0 %v54
    %115 = vmatpush1.msra.mxu0 %v53
    %116 = vmatprep.subr.mxu0 %v51
    %117 = vmatpush1.msra.mxu0 %v50
    %118 = vmatprep.subr.mxu0 0.0
    %119 = vmatpush2.msra.mxu0 0.0
    %120 = vmatprep.subr.mxu0 0.0
    %121 = vmatpush2.msra.mxu0 0.0
    %122 = vmatprep.subr.mxu0 0.0
    %123 = vmatpush2.msra.mxu0 0.0
    %124 = vmatprep.subr.mxu0 0.0
    %125 = vmatpush2.msra.mxu0 0.0
    %126 = vmatprep.subr.mxu0 0.0
    %127 = vmatpush2.msra.mxu0 0.0
    %128 = vmatprep.subr.mxu0 0.0
    %129 = vmatpush2.msra.mxu0 0.0
    %130 = vmatprep.subr.mxu0 0.0
    %131 = vmatpush2.msra.mxu0 0.0
    %132 = vmatprep.subr.mxu0 0.0
    %133 = vmatpush2.msra.mxu0 0.0
    %134 = vmatprep.subr.mxu0 0.0
    %135 = vmatpush2.msra.mxu0 0.0
    %136 = vmatprep.subr.mxu0 0.0
    %137 = vmatpush2.msra.mxu0 0.0
    %138 = vmatprep.subr.mxu0 0.0
    %139 = vmatpush2.msra.mxu0 0.0
    %140 = vmatprep.subr.mxu0 0.0
    %141 = vmatpush2.msra.mxu0 0.0
    %142 = vmatprep.subr.mxu0 0.0
    %143 = vmatpush2.msra.mxu0 0.0
    %144 = vmatprep.subr.mxu0 0.0
    %145 = vmatpush2.msra.mxu0 0.0
    %146 = vmatprep.subr.mxu0 0.0
    %147 = vmatpush2.msra.mxu0 0.0
    %148 = vmatprep.subr.mxu0 0.0
    %149 = vmatpush2.msra.mxu0 0.0
    %150 = vmatprep.mubr.f32.mxu0 0.0
    %151 = vmatmul.mubr.f32.gmra.mxu0 %v81
    %v152 = vpop.f32.mrf.mxu0
    %v153 = vadd.f32 %v67, %v152
    %v154 = vpop.f32.mrf.mxu0
    %v155 = vadd.f32 %v71, %v154
    %156 = vmatprep.mubr.f32.mxu0 0.0
    %157 = vmatmul.mubr.f32.gmra.mxu0 %v84
    %v158 = vpop.f32.mrf.mxu0
    %v159 = vadd.f32 %v67, %v158
    %v160 = vpop.f32.mrf.mxu0
    %v161 = vadd.f32 %v71, %v160
    %162 = vdwg.mxu0
    %163 = vmatprep.subr.mxu0 0.0
    %164 = vmatpush1.msra.mxu0 0.0
    %165 = vmatprep.subr.mxu0 0.0
    %166 = vmatpush1.msra.mxu0 0.0
    %167 = vmatprep.subr.mxu0 0.0
    %168 = vmatpush1.msra.mxu0 0.0
    %169 = vmatprep.subr.mxu0 0.0
    %170 = vmatpush1.msra.mxu0 0.0
    %171 = vmatprep.subr.mxu0 0.0
    %172 = vmatpush1.msra.mxu0 0.0
    %173 = vmatprep.subr.mxu0 0.0
    %174 = vmatpush1.msra.mxu0 0.0
    %175 = vmatprep.subr.mxu0 0.0
    %176 = vmatpush1.msra.mxu0 0.0
    %177 = vmatprep.subr.mxu0 0.0
    %178 = vmatpush1.msra.mxu0 0.0
    %179 = vmatprep.subr.mxu0 0.0
    %180 = vmatpush1.msra.mxu0 0.0
    %181 = vmatprep.subr.mxu0 0.0
    %182 = vmatpush1.msra.mxu0 0.0
    %183 = vmatprep.subr.mxu0 0.0
    %184 = vmatpush1.msra.mxu0 0.0
    %185 = vmatprep.subr.mxu0 0.0
    %186 = vmatpush1.msra.mxu0 0.0
    %187 = vmatprep.subr.mxu0 0.0
    %188 = vmatpush1.msra.mxu0 %v61
    %189 = vmatprep.subr.mxu0 0.0
    %190 = vmatpush1.msra.mxu0 %v58
    %191 = vmatprep.subr.mxu0 0.0
    %192 = vmatpush1.msra.mxu0 %v55
    %193 = vmatprep.subr.mxu0 0.0
    %194 = vmatpush1.msra.mxu0 %v52
    %195 = vmatprep.subr.mxu0 0.0
    %196 = vmatpush2.msra.mxu0 0.0
    %197 = vmatprep.subr.mxu0 0.0
    %198 = vmatpush2.msra.mxu0 0.0
    %199 = vmatprep.subr.mxu0 0.0
    %200 = vmatpush2.msra.mxu0 0.0
    %201 = vmatprep.subr.mxu0 0.0
    %202 = vmatpush2.msra.mxu0 0.0
    %203 = vmatprep.subr.mxu0 0.0
    %204 = vmatpush2.msra.mxu0 0.0
    %205 = vmatprep.subr.mxu0 0.0
    %206 = vmatpush2.msra.mxu0 0.0
    %207 = vmatprep.subr.mxu0 0.0
    %208 = vmatpush2.msra.mxu0 0.0
    %209 = vmatprep.subr.mxu0 0.0
    %210 = vmatpush2.msra.mxu0 0.0
    %211 = vmatprep.subr.mxu0 0.0
    %212 = vmatpush2.msra.mxu0 0.0
    %213 = vmatprep.subr.mxu0 0.0
    %214 = vmatpush2.msra.mxu0 0.0
    %215 = vmatprep.subr.mxu0 0.0
    %216 = vmatpush2.msra.mxu0 0.0
    %217 = vmatprep.subr.mxu0 0.0
    %218 = vmatpush2.msra.mxu0 0.0
    %219 = vmatprep.subr.mxu0 0.0
    %220 = vmatpush2.msra.mxu0 0.0
    %221 = vmatprep.subr.mxu0 0.0
    %222 = vmatpush2.msra.mxu0 0.0
    %223 = vmatprep.subr.mxu0 0.0
    %224 = vmatpush2.msra.mxu0 0.0
    %225 = vmatprep.subr.mxu0 0.0
    %226 = vmatpush2.msra.mxu0 0.0
    %227 = vmatprep.mubr.f32.mxu0 0.0
    %228 = vmatmul.mubr.f32.gmra.mxu0 %v81
    %v229 = vpop.f32.mrf.mxu0
    %v230 = vadd.f32 %v75, %v229
    %v231 = vpop.f32.mrf.mxu0
    %232 = vmatprep.mubr.f32.mxu0 0.0
    %233 = vmatmul.mubr.f32.gmra.mxu0 %v84
    %v234 = vpop.f32.mrf.mxu0
    %v235 = vadd.f32 %v75, %v234
    %v236 = vpop.f32.mrf.mxu0
    %237 = vdwg.mxu0
    %v238 = vld [vmem:[#allocation4] sm:$0xff]
    %v239 = vld [vmem:[#allocation4 + $0x8] sm:$0xff]
    %v240 = vld [vmem:[#allocation4 + $0x10] sm:$0xff]
    %v241 = vld [vmem:[#allocation4 + $0x18] sm:$0xff]
    %v242 = vld [vmem:[#allocation4 + $0x20] sm:$0xff]
    %v243 = vld [vmem:[#allocation4 + $0x28] sm:$0xff]
    %v244 = vld [vmem:[#allocation4 + $0x30] sm:$0xff]
    %v245 = vld [vmem:[#allocation4 + $0x38] sm:$0xff]
    %v246 = vld [vmem:[#allocation4 + $0x40] sm:$0xff]
    %v247 = vld [vmem:[#allocation4 + $0x48] sm:$0xff]
    %v248 = vld [vmem:[#allocation4 + $0x50] sm:$0xff]
    %v249 = vld [vmem:[#allocation4 + $0x58] sm:$0xff]
    %v250 = vld [vmem:[#allocation4 + $0x60] sm:$0xff]
    %v251 = vld [vmem:[#allocation4 + $0x68] sm:$0xff]
    %v252 = vld [vmem:[#allocation4 + $0x70] sm:$0xff]
    %v253 = vld [vmem:[#allocation4 + $0x78] sm:$0xff]
    %v254 = vld [vmem:[#allocation4 + $0x80] sm:$0xff]
    %v255 = vld [vmem:[#allocation4 + $0x88] sm:$0xff]
    %v256 = vld [vmem:[#allocation4 + $0x90] sm:$0xff]
    %v257 = vld [vmem:[#allocation4 + $0x98] sm:$0xff]
    %v258 = vld [vmem:[#allocation4 + $0xa0] sm:$0xff]
    %v259 = vld [vmem:[#allocation4 + $0xa8] sm:$0xff]
    %v260 = vld [vmem:[#allocation4 + $0xb0] sm:$0xff]
    %v261 = vld [vmem:[#allocation4 + $0xb8] sm:$0xff]
    %v262 = vld [vmem:[#allocation4 + $0xc0] sm:$0xff]
    %v263 = vld [vmem:[#allocation4 + $0xc8] sm:$0xff]
    %v264 = vld [vmem:[#allocation4 + $0xd0] sm:$0xff]
    %v265 = vld [vmem:[#allocation4 + $0xd8] sm:$0xff]
    %v266 = vld [vmem:[#allocation4 + $0xe0] sm:$0xff]
    %v267 = vld [vmem:[#allocation4 + $0xe8] sm:$0xff]
    %v268 = vld [vmem:[#allocation4 + $0xf0] sm:$0xff]
    %v269 = vld [vmem:[#allocation4 + $0xf8] sm:$0xff]
    %v270 = vld [vmem:[#allocation4 + $0x100] sm:$0xff]
    %v271 = vld [vmem:[#allocation4 + $0x108] sm:$0xff]
    %v272 = vld [vmem:[#allocation4 + $0x110] sm:$0xff]
    %v273 = vld [vmem:[#allocation4 + $0x118] sm:$0xff]
    %v274 = vld [vmem:[#allocation4 + $0x120] sm:$0xff]
    %v275 = vld [vmem:[#allocation4 + $0x128] sm:$0xff]
    %v276 = vld [vmem:[#allocation4 + $0x130] sm:$0xff]
    %v277 = vld [vmem:[#allocation4 + $0x138] sm:$0xff]
    %v278 = vld [vmem:[#allocation4 + $0x140] sm:$0xff]
    %v279 = vld [vmem:[#allocation4 + $0x148] sm:$0xff]
    %v280 = vld [vmem:[#allocation4 + $0x150] sm:$0xff]
    %v281 = vld [vmem:[#allocation4 + $0x158] sm:$0xff]
    %v282 = vld [vmem:[#allocation4 + $0x160] sm:$0xff]
    %v283 = vld [vmem:[#allocation4 + $0x168] sm:$0xff]
    %v284 = vld [vmem:[#allocation4 + $0x170] sm:$0xff]
    %v285 = vld [vmem:[#allocation4 + $0x178] sm:$0xff]
    %v286 = vld [vmem:[%s4] sm:$0x7]
    %v288 = vlaneseq
    %v289 = vshrl.u32 %v288, 7
    %v290 = vsub.s32 0, %v289
    %v291 = vrot.slane %v286, %v290
    %v292 = vlaneseq
    %v293 = vshrl.u32 %v292, 7
    %v294 = vsub.s32 1, %v293
    %v295 = vrot.slane %v286, %v294
    %v296 = vlaneseq
    %v297 = vshrl.u32 %v296, 7
    %v298 = vsub.s32 2, %v297
    %v299 = vrot.slane %v286, %v298
    %303 = vmatprep.subr.mxu0 %v284
    %304 = vmatpush1.msra.mxu0 %v283
    %305 = vmatprep.subr.mxu0 %v281
    %306 = vmatpush1.msra.mxu0 %v280
    %307 = vmatprep.subr.mxu0 %v278
    %308 = vmatpush1.msra.mxu0 %v277
    %309 = vmatprep.subr.mxu0 %v275
    %310 = vmatpush1.msra.mxu0 %v274
    %311 = vmatprep.subr.mxu0 %v272
    %312 = vmatpush1.msra.mxu0 %v271
    %313 = vmatprep.subr.mxu0 %v269
    %314 = vmatpush1.msra.mxu0 %v268
    %315 = vmatprep.subr.mxu0 %v266
    %316 = vmatpush1.msra.mxu0 %v265
    %317 = vmatprep.subr.mxu0 %v263
    %318 = vmatpush1.msra.mxu0 %v262
    %319 = vmatprep.subr.mxu0 %v260
    %320 = vmatpush1.msra.mxu0 %v259
    %321 = vmatprep.subr.mxu0 %v257
    %322 = vmatpush1.msra.mxu0 %v256
    %323 = vmatprep.subr.mxu0 %v254
    %324 = vmatpush1.msra.mxu0 %v253
    %325 = vmatprep.subr.mxu0 %v251
    %326 = vmatpush1.msra.mxu0 %v250
    %327 = vmatprep.subr.mxu0 %v248
    %328 = vmatpush1.msra.mxu0 %v247
    %329 = vmatprep.subr.mxu0 %v245
    %330 = vmatpush1.msra.mxu0 %v244
    %331 = vmatprep.subr.mxu0 %v242
    %332 = vmatpush1.msra.mxu0 %v241
    %333 = vmatprep.subr.mxu0 %v239
    %334 = vmatpush1.msra.mxu0 %v238
    %335 = vmatprep.subr.mxu0 0.0
    %336 = vmatpush2.msra.mxu0 0.0
    %337 = vmatprep.subr.mxu0 0.0
    %338 = vmatpush2.msra.mxu0 0.0
    %339 = vmatprep.subr.mxu0 0.0
    %340 = vmatpush2.msra.mxu0 0.0
    %341 = vmatprep.subr.mxu0 0.0
    %342 = vmatpush2.msra.mxu0 0.0
    %343 = vmatprep.subr.mxu0 0.0
    %344 = vmatpush2.msra.mxu0 0.0
    %345 = vmatprep.subr.mxu0 0.0
    %346 = vmatpush2.msra.mxu0 0.0
    %347 = vmatprep.subr.mxu0 0.0
    %348 = vmatpush2.msra.mxu0 0.0
    %349 = vmatprep.subr.mxu0 0.0
    %350 = vmatpush2.msra.mxu0 0.0
    %351 = vmatprep.subr.mxu0 0.0
    %352 = vmatpush2.msra.mxu0 0.0
    %353 = vmatprep.subr.mxu0 0.0
    %354 = vmatpush2.msra.mxu0 0.0
    %355 = vmatprep.subr.mxu0 0.0
    %356 = vmatpush2.msra.mxu0 0.0
    %357 = vmatprep.subr.mxu0 0.0
    %358 = vmatpush2.msra.mxu0 0.0
    %359 = vmatprep.subr.mxu0 0.0
    %360 = vmatpush2.msra.mxu0 0.0
    %361 = vmatprep.subr.mxu0 0.0
    %362 = vmatpush2.msra.mxu0 0.0
    %363 = vmatprep.subr.mxu0 0.0
    %364 = vmatpush2.msra.mxu0 0.0
    %365 = vmatprep.subr.mxu0 0.0
    %366 = vmatpush2.msra.mxu0 0.0
    %367 = vmatprep.mubr.f32.mxu0 0.0
    %368 = vmatmul.mubr.f32.gmra.mxu0 0.0
    %v369 = vpop.f32.mrf.mxu0
    %v370 = vadd.f32 %v291, %v369
    %v371 = vpop.f32.mrf.mxu0
    %v372 = vadd.f32 %v295, %v371
    %373 = vdwg.mxu0
    %374 = vmatprep.subr.mxu0 0.0
    %375 = vmatpush1.msra.mxu0 %v285
    %376 = vmatprep.subr.mxu0 0.0
    %377 = vmatpush1.msra.mxu0 %v282
    %378 = vmatprep.subr.mxu0 0.0
    %379 = vmatpush1.msra.mxu0 %v279
    %380 = vmatprep.subr.mxu0 0.0
    %381 = vmatpush1.msra.mxu0 %v276
    %382 = vmatprep.subr.mxu0 0.0
    %383 = vmatpush1.msra.mxu0 %v273
    %384 = vmatprep.subr.mxu0 0.0
    %385 = vmatpush1.msra.mxu0 %v270
    %386 = vmatprep.subr.mxu0 0.0
    %387 = vmatpush1.msra.mxu0 %v267
    %388 = vmatprep.subr.mxu0 0.0
    %389 = vmatpush1.msra.mxu0 %v264
    %390 = vmatprep.subr.mxu0 0.0
    %391 = vmatpush1.msra.mxu0 %v261
    %392 = vmatprep.subr.mxu0 0.0
    %393 = vmatpush1.msra.mxu0 %v258
    %394 = vmatprep.subr.mxu0 0.0
    %395 = vmatpush1.msra.mxu0 %v255
    %396 = vmatprep.subr.mxu0 0.0
    %397 = vmatpush1.msra.mxu0 %v252
    %398 = vmatprep.subr.mxu0 0.0
    %399 = vmatpush1.msra.mxu0 %v249
    %400 = vmatprep.subr.mxu0 0.0
    %401 = vmatpush1.msra.mxu0 %v246
    %402 = vmatprep.subr.mxu0 0.0
    %403 = vmatpush1.msra.mxu0 %v243
    %404 = vmatprep.subr.mxu0 0.0
    %405 = vmatpush1.msra.mxu0 %v240
    %406 = vmatprep.subr.mxu0 0.0
    %407 = vmatpush2.msra.mxu0 0.0
    %408 = vmatprep.subr.mxu0 0.0
    %409 = vmatpush2.msra.mxu0 0.0
    %410 = vmatprep.subr.mxu0 0.0
    %411 = vmatpush2.msra.mxu0 0.0
    %412 = vmatprep.subr.mxu0 0.0
    %413 = vmatpush2.msra.mxu0 0.0
    %414 = vmatprep.subr.mxu0 0.0
    %415 = vmatpush2.msra.mxu0 0.0
    %416 = vmatprep.subr.mxu0 0.0
    %417 = vmatpush2.msra.mxu0 0.0
    %418 = vmatprep.subr.mxu0 0.0
    %419 = vmatpush2.msra.mxu0 0.0
    %420 = vmatprep.subr.mxu0 0.0
    %421 = vmatpush2.msra.mxu0 0.0
    %422 = vmatprep.subr.mxu0 0.0
    %423 = vmatpush2.msra.mxu0 0.0
    %424 = vmatprep.subr.mxu0 0.0
    %425 = vmatpush2.msra.mxu0 0.0
    %426 = vmatprep.subr.mxu0 0.0
    %427 = vmatpush2.msra.mxu0 0.0
    %428 = vmatprep.subr.mxu0 0.0
    %429 = vmatpush2.msra.mxu0 0.0
    %430 = vmatprep.subr.mxu0 0.0
    %431 = vmatpush2.msra.mxu0 0.0
    %432 = vmatprep.subr.mxu0 0.0
    %433 = vmatpush2.msra.mxu0 0.0
    %434 = vmatprep.subr.mxu0 0.0
    %435 = vmatpush2.msra.mxu0 0.0
    %436 = vmatprep.subr.mxu0 0.0
    %437 = vmatpush2.msra.mxu0 0.0
    %438 = vmatprep.mubr.f32.mxu0 0.0
    %439 = vmatmul.mubr.f32.gmra.mxu0 0.0
    %v440 = vpop.f32.mrf.mxu0
    %v441 = vadd.f32 %v299, %v440
    %v442 = vpop.f32.mrf.mxu0
    %443 = vdwg.mxu0
    %v444 = vadd.f32 %v153, %v370
    %v445 = vxor.u32 %v444, 2147483648
    %v446 = vmul.f32 %v445, 1.442695
    %v447 = vpow.pop %v446
    %v448 = vadd.f32 %v447, 1.0
    %v449 = vrcp.pop %v448
    %v450 = vmul.f32 1.0, %v449
    %v451 = vadd.f32 %v155, %v372
    %v452 = vxor.u32 %v451, 2147483648
    %v453 = vmul.f32 %v452, 1.442695
    %v454 = vpow.pop %v453
    %v455 = vadd.f32 %v454, 1.0
    %v456 = vrcp.pop %v455
    %v457 = vmul.f32 1.0, %v456
    %v458 = vmul.f32 %v450, %v441
    %v459 = vadd.f32 %v230, %v458
    %v460 = vtanh.pop %v459
    %v461 = vsub.f32 1.0, %v457
    %v462 = vmul.f32 %v461, %v460
    %v463 = vmul.f32 %v457, 0.0
    %v464 = vadd.f32 %v462, %v463
    %465 = vst [vmem:[%s5] sm:$0x3] %v464
    %466 = vmatprep.subr.mxu0 %v284
    %467 = vmatpush1.msra.mxu0 %v283
    %468 = vmatprep.subr.mxu0 %v281
    %469 = vmatpush1.msra.mxu0 %v280
    %470 = vmatprep.subr.mxu0 %v278
    %471 = vmatpush1.msra.mxu0 %v277
    %472 = vmatprep.subr.mxu0 %v275
    %473 = vmatpush1.msra.mxu0 %v274
    %474 = vmatprep.subr.mxu0 %v272
    %475 = vmatpush1.msra.mxu0 %v271
    %476 = vmatprep.subr.mxu0 %v269
    %477 = vmatpush1.msra.mxu0 %v268
    %478 = vmatprep.subr.mxu0 %v266
    %479 = vmatpush1.msra.mxu0 %v265
    %480 = vmatprep.subr.mxu0 %v263
    %481 = vmatpush1.msra.mxu0 %v262
    %482 = vmatprep.subr.mxu0 %v260
    %483 = vmatpush1.msra.mxu0 %v259
    %484 = vmatprep.subr.mxu0 %v257
    %485 = vmatpush1.msra.mxu0 %v256
    %486 = vmatprep.subr.mxu0 %v254
    %487 = vmatpush1.msra.mxu0 %v253
    %488 = vmatprep.subr.mxu0 %v251
    %489 = vmatpush1.msra.mxu0 %v250
    %490 = vmatprep.subr.mxu0 %v248
    %491 = vmatpush1.msra.mxu0 %v247
    %492 = vmatprep.subr.mxu0 %v245
    %493 = vmatpush1.msra.mxu0 %v244
    %494 = vmatprep.subr.mxu0 %v242
    %495 = vmatpush1.msra.mxu0 %v241
    %496 = vmatprep.subr.mxu0 %v239
    %497 = vmatpush1.msra.mxu0 %v238
    %498 = vmatprep.subr.mxu0 0.0
    %499 = vmatpush2.msra.mxu0 0.0
    %500 = vmatprep.subr.mxu0 0.0
    %501 = vmatpush2.msra.mxu0 0.0
    %502 = vmatprep.subr.mxu0 0.0
    %503 = vmatpush2.msra.mxu0 0.0
    %504 = vmatprep.subr.mxu0 0.0
    %505 = vmatpush2.msra.mxu0 0.0
    %506 = vmatprep.subr.mxu0 0.0
    %507 = vmatpush2.msra.mxu0 0.0
    %508 = vmatprep.subr.mxu0 0.0
    %509 = vmatpush2.msra.mxu0 0.0
    %510 = vmatprep.subr.mxu0 0.0
    %511 = vmatpush2.msra.mxu0 0.0
    %512 = vmatprep.subr.mxu0 0.0
    %513 = vmatpush2.msra.mxu0 0.0
    %514 = vmatprep.subr.mxu0 0.0
    %515 = vmatpush2.msra.mxu0 0.0
    %516 = vmatprep.subr.mxu0 0.0
    %517 = vmatpush2.msra.mxu0 0.0
    %518 = vmatprep.subr.mxu0 0.0
    %519 = vmatpush2.msra.mxu0 0.0
    %520 = vmatprep.subr.mxu0 0.0
    %521 = vmatpush2.msra.mxu0 0.0
    %522 = vmatprep.subr.mxu0 0.0
    %523 = vmatpush2.msra.mxu0 0.0
    %524 = vmatprep.subr.mxu0 0.0
    %525 = vmatpush2.msra.mxu0 0.0
    %526 = vmatprep.subr.mxu0 0.0
    %527 = vmatpush2.msra.mxu0 0.0
    %528 = vmatprep.subr.mxu0 0.0
    %529 = vmatpush2.msra.mxu0 0.0
    %530 = vmatprep.mubr.f32.mxu0 0.0
    %531 = vmatmul.mubr.f32.gmra.mxu0 %v464
    %v532 = vpop.f32.mrf.mxu0
    %v533 = vadd.f32 %v291, %v532
    %v534 = vpop.f32.mrf.mxu0
    %v535 = vadd.f32 %v295, %v534
    %536 = vdwg.mxu0
    %537 = vmatprep.subr.mxu0 0.0
    %538 = vmatpush1.msra.mxu0 %v285
    %539 = vmatprep.subr.mxu0 0.0
    %540 = vmatpush1.msra.mxu0 %v282
    %541 = vmatprep.subr.mxu0 0.0
    %542 = vmatpush1.msra.mxu0 %v279
    %543 = vmatprep.subr.mxu0 0.0
    %544 = vmatpush1.msra.mxu0 %v276
    %545 = vmatprep.subr.mxu0 0.0
    %546 = vmatpush1.msra.mxu0 %v273
    %547 = vmatprep.subr.mxu0 0.0
    %548 = vmatpush1.msra.mxu0 %v270
    %549 = vmatprep.subr.mxu0 0.0
    %550 = vmatpush1.msra.mxu0 %v267
    %551 = vmatprep.subr.mxu0 0.0
    %552 = vmatpush1.msra.mxu0 %v264
    %553 = vmatprep.subr.mxu0 0.0
    %554 = vmatpush1.msra.mxu0 %v261
    %555 = vmatprep.subr.mxu0 0.0
    %556 = vmatpush1.msra.mxu0 %v258
    %557 = vmatprep.subr.mxu0 0.0
    %558 = vmatpush1.msra.mxu0 %v255
    %559 = vmatprep.subr.mxu0 0.0
    %560 = vmatpush1.msra.mxu0 %v252
    %561 = vmatprep.subr.mxu0 0.0
    %562 = vmatpush1.msra.mxu0 %v249
    %563 = vmatprep.subr.mxu0 0.0
    %564 = vmatpush1.msra.mxu0 %v246
    %565 = vmatprep.subr.mxu0 0.0
    %566 = vmatpush1.msra.mxu0 %v243
    %567 = vmatprep.subr.mxu0 0.0
    %568 = vmatpush1.msra.mxu0 %v240
    %569 = vmatprep.subr.mxu0 0.0
    %570 = vmatpush2.msra.mxu0 0.0
    %571 = vmatprep.subr.mxu0 0.0
    %572 = vmatpush2.msra.mxu0 0.0
    %573 = vmatprep.subr.mxu0 0.0
    %574 = vmatpush2.msra.mxu0 0.0
    %575 = vmatprep.subr.mxu0 0.0
    %576 = vmatpush2.msra.mxu0 0.0
    %577 = vmatprep.subr.mxu0 0.0
    %578 = vmatpush2.msra.mxu0 0.0
    %579 = vmatprep.subr.mxu0 0.0
    %580 = vmatpush2.msra.mxu0 0.0
    %581 = vmatprep.subr.mxu0 0.0
    %582 = vmatpush2.msra.mxu0 0.0
    %583 = vmatprep.subr.mxu0 0.0
    %584 = vmatpush2.msra.mxu0 0.0
    %585 = vmatprep.subr.mxu0 0.0
    %586 = vmatpush2.msra.mxu0 0.0
    %587 = vmatprep.subr.mxu0 0.0
    %588 = vmatpush2.msra.mxu0 0.0
    %589 = vmatprep.subr.mxu0 0.0
    %590 = vmatpush2.msra.mxu0 0.0
    %591 = vmatprep.subr.mxu0 0.0
    %592 = vmatpush2.msra.mxu0 0.0
    %593 = vmatprep.subr.mxu0 0.0
    %594 = vmatpush2.msra.mxu0 0.0
    %595 = vmatprep.subr.mxu0 0.0
    %596 = vmatpush2.msra.mxu0 0.0
    %597 = vmatprep.subr.mxu0 0.0
    %598 = vmatpush2.msra.mxu0 0.0
    %599 = vmatprep.subr.mxu0 0.0
    %600 = vmatpush2.msra.mxu0 0.0
    %601 = vmatprep.mubr.f32.mxu0 0.0
    %602 = vmatmul.mubr.f32.gmra.mxu0 %v464
    %v603 = vpop.f32.mrf.mxu0
    %v604 = vadd.f32 %v299, %v603
    %v605 = vpop.f32.mrf.mxu0
    %606 = vdwg.mxu0
    %v608 = vrot.slane %v533, 6
    %v610 = vadd.f32 %v153, %v608
    %v611 = vxor.u32 %v610, 2147483648
    %v612 = vmul.f32 %v611, 1.442695
    %v613 = vpow.pop %v612
    %v614 = vadd.f32 %v613, 1.0
    %v615 = vrcp.pop %v614
    %v616 = vmul.f32 1.0, %v615
    %v618 = vrot.slane %v535, 6
    %v620 = vadd.f32 %v155, %v618
    %v621 = vxor.u32 %v620, 2147483648
    %v622 = vmul.f32 %v621, 1.442695
    %v623 = vpow.pop %v622
    %v624 = vadd.f32 %v623, 1.0
    %v625 = vrcp.pop %v624
    %v626 = vmul.f32 1.0, %v625
    %v628 = vrot.slane %v604, 6
    %v630 = vmul.f32 %v616, %v628
    %v631 = vadd.f32 %v230, %v630
    %v632 = vtanh.pop %v631
    %v633 = vsub.f32 1.0, %v626
    %v634 = vmul.f32 %v633, %v632
    %v636 = vrot.slane %v464, 6
    %v638 = vmul.f32 %v626, %v636
    %v639 = vadd.f32 %v634, %v638
    %640 = vst [vmem:[%s5] sm:$0xc] %v639
    %v642 = vrot.slane %v639, 2
    %644 = vmatprep.subr.mxu0 %v284
    %645 = vmatpush1.msra.mxu0 %v283
    %646 = vmatprep.subr.mxu0 %v281
    %647 = vmatpush1.msra.mxu0 %v280
    %648 = vmatprep.subr.mxu0 %v278
    %649 = vmatpush1.msra.mxu0 %v277
    %650 = vmatprep.subr.mxu0 %v275
    %651 = vmatpush1.msra.mxu0 %v274
    %652 = vmatprep.subr.mxu0 %v272
    %653 = vmatpush1.msra.mxu0 %v271
    %654 = vmatprep.subr.mxu0 %v269
    %655 = vmatpush1.msra.mxu0 %v268
    %656 = vmatprep.subr.mxu0 %v266
    %657 = vmatpush1.msra.mxu0 %v265
    %658 = vmatprep.subr.mxu0 %v263
    %659 = vmatpush1.msra.mxu0 %v262
    %660 = vmatprep.subr.mxu0 %v260
    %661 = vmatpush1.msra.mxu0 %v259
    %662 = vmatprep.subr.mxu0 %v257
    %663 = vmatpush1.msra.mxu0 %v256
    %664 = vmatprep.subr.mxu0 %v254
    %665 = vmatpush1.msra.mxu0 %v253
    %666 = vmatprep.subr.mxu0 %v251
    %667 = vmatpush1.msra.mxu0 %v250
    %668 = vmatprep.subr.mxu0 %v248
    %669 = vmatpush1.msra.mxu0 %v247
    %670 = vmatprep.subr.mxu0 %v245
    %671 = vmatpush1.msra.mxu0 %v244
    %672 = vmatprep.subr.mxu0 %v242
    %673 = vmatpush1.msra.mxu0 %v241
    %674 = vmatprep.subr.mxu0 %v239
    %675 = vmatpush1.msra.mxu0 %v238
    %676 = vmatprep.subr.mxu0 0.0
    %677 = vmatpush2.msra.mxu0 0.0
    %678 = vmatprep.subr.mxu0 0.0
    %679 = vmatpush2.msra.mxu0 0.0
    %680 = vmatprep.subr.mxu0 0.0
    %681 = vmatpush2.msra.mxu0 0.0
    %682 = vmatprep.subr.mxu0 0.0
    %683 = vmatpush2.msra.mxu0 0.0
    %684 = vmatprep.subr.mxu0 0.0
    %685 = vmatpush2.msra.mxu0 0.0
    %686 = vmatprep.subr.mxu0 0.0
    %687 = vmatpush2.msra.mxu0 0.0
    %688 = vmatprep.subr.mxu0 0.0
    %689 = vmatpush2.msra.mxu0 0.0
    %690 = vmatprep.subr.mxu0 0.0
    %691 = vmatpush2.msra.mxu0 0.0
    %692 = vmatprep.subr.mxu0 0.0
    %693 = vmatpush2.msra.mxu0 0.0
    %694 = vmatprep.subr.mxu0 0.0
    %695 = vmatpush2.msra.mxu0 0.0
    %696 = vmatprep.subr.mxu0 0.0
    %697 = vmatpush2.msra.mxu0 0.0
    %698 = vmatprep.subr.mxu0 0.0
    %699 = vmatpush2.msra.mxu0 0.0
    %700 = vmatprep.subr.mxu0 0.0
    %701 = vmatpush2.msra.mxu0 0.0
    %702 = vmatprep.subr.mxu0 0.0
    %703 = vmatpush2.msra.mxu0 0.0
    %704 = vmatprep.subr.mxu0 0.0
    %705 = vmatpush2.msra.mxu0 0.0
    %706 = vmatprep.subr.mxu0 0.0
    %707 = vmatpush2.msra.mxu0 0.0
    %708 = vmatprep.mubr.f32.mxu0 0.0
    %709 = vmatmul.mubr.f32.gmra.mxu0 %v642
    %v710 = vpop.f32.mrf.mxu0
    %v711 = vadd.f32 %v291, %v710
    %v712 = vpop.f32.mrf.mxu0
    %v713 = vadd.f32 %v295, %v712
    %714 = vdwg.mxu0
    %715 = vmatprep.subr.mxu0 0.0
    %716 = vmatpush1.msra.mxu0 %v285
    %717 = vmatprep.subr.mxu0 0.0
    %718 = vmatpush1.msra.mxu0 %v282
    %719 = vmatprep.subr.mxu0 0.0
    %720 = vmatpush1.msra.mxu0 %v279
    %721 = vmatprep.subr.mxu0 0.0
    %722 = vmatpush1.msra.mxu0 %v276
    %723 = vmatprep.subr.mxu0 0.0
    %724 = vmatpush1.msra.mxu0 %v273
    %725 = vmatprep.subr.mxu0 0.0
    %726 = vmatpush1.msra.mxu0 %v270
    %727 = vmatprep.subr.mxu0 0.0
    %728 = vmatpush1.msra.mxu0 %v267
    %729 = vmatprep.subr.mxu0 0.0
    %730 = vmatpush1.msra.mxu0 %v264
    %731 = vmatprep.subr.mxu0 0.0
    %732 = vmatpush1.msra.mxu0 %v261
    %733 = vmatprep.subr.mxu0 0.0
    %734 = vmatpush1.msra.mxu0 %v258
    %735 = vmatprep.subr.mxu0 0.0
    %736 = vmatpush1.msra.mxu0 %v255
    %737 = vmatprep.subr.mxu0 0.0
    %738 = vmatpush1.msra.mxu0 %v252
    %739 = vmatprep.subr.mxu0 0.0
    %740 = vmatpush1.msra.mxu0 %v249
    %741 = vmatprep.subr.mxu0 0.0
    %742 = vmatpush1.msra.mxu0 %v246
    %743 = vmatprep.subr.mxu0 0.0
    %744 = vmatpush1.msra.mxu0 %v243
    %745 = vmatprep.subr.mxu0 0.0
    %746 = vmatpush1.msra.mxu0 %v240
    %747 = vmatprep.subr.mxu0 0.0
    %748 = vmatpush2.msra.mxu0 0.0
    %749 = vmatprep.subr.mxu0 0.0
    %750 = vmatpush2.msra.mxu0 0.0
    %751 = vmatprep.subr.mxu0 0.0
    %752 = vmatpush2.msra.mxu0 0.0
    %753 = vmatprep.subr.mxu0 0.0
    %754 = vmatpush2.msra.mxu0 0.0
    %755 = vmatprep.subr.mxu0 0.0
    %756 = vmatpush2.msra.mxu0 0.0
    %757 = vmatprep.subr.mxu0 0.0
    %758 = vmatpush2.msra.mxu0 0.0
    %759 = vmatprep.subr.mxu0 0.0
    %760 = vmatpush2.msra.mxu0 0.0
    %761 = vmatprep.subr.mxu0 0.0
    %762 = vmatpush2.msra.mxu0 0.0
    %763 = vmatprep.subr.mxu0 0.0
    %764 = vmatpush2.msra.mxu0 0.0
    %765 = vmatprep.subr.mxu0 0.0
    %766 = vmatpush2.msra.mxu0 0.0
    %767 = vmatprep.subr.mxu0 0.0
    %768 = vmatpush2.msra.mxu0 0.0
    %769 = vmatprep.subr.mxu0 0.0
    %770 = vmatpush2.msra.mxu0 0.0
    %771 = vmatprep.subr.mxu0 0.0
    %772 = vmatpush2.msra.mxu0 0.0
    %773 = vmatprep.subr.mxu0 0.0
    %774 = vmatpush2.msra.mxu0 0.0
    %775 = vmatprep.subr.mxu0 0.0
    %776 = vmatpush2.msra.mxu0 0.0
    %777 = vmatprep.subr.mxu0 0.0
    %778 = vmatpush2.msra.mxu0 0.0
    %779 = vmatprep.mubr.f32.mxu0 0.0
    %780 = vmatmul.mubr.f32.gmra.mxu0 %v642
    %v781 = vpop.f32.mrf.mxu0
    %v782 = vadd.f32 %v299, %v781
    %v783 = vpop.f32.mrf.mxu0
    %784 = vdwg.mxu0
    %v786 = vrot.slane %v711, 4
    %v788 = vadd.f32 %v153, %v786
    %v789 = vxor.u32 %v788, 2147483648
    %v790 = vmul.f32 %v789, 1.442695
    %v791 = vpow.pop %v790
    %v792 = vadd.f32 %v791, 1.0
    %v793 = vrcp.pop %v792
    %v794 = vmul.f32 1.0, %v793
    %v796 = vrot.slane %v713, 4
    %v798 = vadd.f32 %v155, %v796
    %v799 = vxor.u32 %v798, 2147483648
    %v800 = vmul.f32 %v799, 1.442695
    %v801 = vpow.pop %v800
    %v802 = vadd.f32 %v801, 1.0
    %v803 = vrcp.pop %v802
    %v804 = vmul.f32 1.0, %v803
    %v806 = vrot.slane %v782, 4
    %v808 = vmul.f32 %v794, %v806
    %v809 = vadd.f32 %v230, %v808
    %v810 = vtanh.pop %v809
    %v811 = vsub.f32 1.0, %v804
    %v812 = vmul.f32 %v811, %v810
    %v813 = vrot.slane %v639, 6
    %v815 = vmul.f32 %v804, %v813
    %v816 = vadd.f32 %v812, %v815
    %817 = vst [vmem:[%s5] sm:$0x30] %v816
    %v819 = vrot.slane %v816, 4
    %821 = vmatprep.subr.mxu0 %v284
    %822 = vmatpush1.msra.mxu0 %v283
    %823 = vmatprep.subr.mxu0 %v281
    %824 = vmatpush1.msra.mxu0 %v280
    %825 = vmatprep.subr.mxu0 %v278
    %826 = vmatpush1.msra.mxu0 %v277
    %827 = vmatprep.subr.mxu0 %v275
    %828 = vmatpush1.msra.mxu0 %v274
    %829 = vmatprep.subr.mxu0 %v272
    %830 = vmatpush1.msra.mxu0 %v271
    %831 = vmatprep.subr.mxu0 %v269
    %832 = vmatpush1.msra.mxu0 %v268
    %833 = vmatprep.subr.mxu0 %v266
    %834 = vmatpush1.msra.mxu0 %v265
    %835 = vmatprep.subr.mxu0 %v263
    %836 = vmatpush1.msra.mxu0 %v262
    %837 = vmatprep.subr.mxu0 %v260
    %838 = vmatpush1.msra.mxu0 %v259
    %839 = vmatprep.subr.mxu0 %v257
    %840 = vmatpush1.msra.mxu0 %v256
    %841 = vmatprep.subr.mxu0 %v254
    %842 = vmatpush1.msra.mxu0 %v253
    %843 = vmatprep.subr.mxu0 %v251
    %844 = vmatpush1.msra.mxu0 %v250
    %845 = vmatprep.subr.mxu0 %v248
    %846 = vmatpush1.msra.mxu0 %v247
    %847 = vmatprep.subr.mxu0 %v245
    %848 = vmatpush1.msra.mxu0 %v244
    %849 = vmatprep.subr.mxu0 %v242
    %850 = vmatpush1.msra.mxu0 %v241
    %851 = vmatprep.subr.mxu0 %v239
    %852 = vmatpush1.msra.mxu0 %v238
    %853 = vmatprep.subr.mxu0 0.0
    %854 = vmatpush2.msra.mxu0 0.0
    %855 = vmatprep.subr.mxu0 0.0
    %856 = vmatpush2.msra.mxu0 0.0
    %857 = vmatprep.subr.mxu0 0.0
    %858 = vmatpush2.msra.mxu0 0.0
    %859 = vmatprep.subr.mxu0 0.0
    %860 = vmatpush2.msra.mxu0 0.0
    %861 = vmatprep.subr.mxu0 0.0
    %862 = vmatpush2.msra.mxu0 0.0
    %863 = vmatprep.subr.mxu0 0.0
    %864 = vmatpush2.msra.mxu0 0.0
    %865 = vmatprep.subr.mxu0 0.0
    %866 = vmatpush2.msra.mxu0 0.0
    %867 = vmatprep.subr.mxu0 0.0
    %868 = vmatpush2.msra.mxu0 0.0
    %869 = vmatprep.subr.mxu0 0.0
    %870 = vmatpush2.msra.mxu0 0.0
    %871 = vmatprep.subr.mxu0 0.0
    %872 = vmatpush2.msra.mxu0 0.0
    %873 = vmatprep.subr.mxu0 0.0
    %874 = vmatpush2.msra.mxu0 0.0
    %875 = vmatprep.subr.mxu0 0.0
    %876 = vmatpush2.msra.mxu0 0.0
    %877 = vmatprep.subr.mxu0 0.0
    %878 = vmatpush2.msra.mxu0 0.0
    %879 = vmatprep.subr.mxu0 0.0
    %880 = vmatpush2.msra.mxu0 0.0
    %881 = vmatprep.subr.mxu0 0.0
    %882 = vmatpush2.msra.mxu0 0.0
    %883 = vmatprep.subr.mxu0 0.0
    %884 = vmatpush2.msra.mxu0 0.0
    %885 = vmatprep.mubr.f32.mxu0 0.0
    %886 = vmatmul.mubr.f32.gmra.mxu0 %v819
    %v887 = vpop.f32.mrf.mxu0
    %v888 = vadd.f32 %v291, %v887
    %v889 = vpop.f32.mrf.mxu0
    %v890 = vadd.f32 %v295, %v889
    %891 = vdwg.mxu0
    %892 = vmatprep.subr.mxu0 0.0
    %893 = vmatpush1.msra.mxu0 %v285
    %894 = vmatprep.subr.mxu0 0.0
    %895 = vmatpush1.msra.mxu0 %v282
    %896 = vmatprep.subr.mxu0 0.0
    %897 = vmatpush1.msra.mxu0 %v279
    %898 = vmatprep.subr.mxu0 0.0
    %899 = vmatpush1.msra.mxu0 %v276
    %900 = vmatprep.subr.mxu0 0.0
    %901 = vmatpush1.msra.mxu0 %v273
    %902 = vmatprep.subr.mxu0 0.0
    %903 = vmatpush1.msra.mxu0 %v270
    %904 = vmatprep.subr.mxu0 0.0
    %905 = vmatpush1.msra.mxu0 %v267
    %906 = vmatprep.subr.mxu0 0.0
    %907 = vmatpush1.msra.mxu0 %v264
    %908 = vmatprep.subr.mxu0 0.0
    %909 = vmatpush1.msra.mxu0 %v261
    %910 = vmatprep.subr.mxu0 0.0
    %911 = vmatpush1.msra.mxu0 %v258
    %912 = vmatprep.subr.mxu0 0.0
    %913 = vmatpush1.msra.mxu0 %v255
    %914 = vmatprep.subr.mxu0 0.0
    %915 = vmatpush1.msra.mxu0 %v252
    %916 = vmatprep.subr.mxu0 0.0
    %917 = vmatpush1.msra.mxu0 %v249
    %918 = vmatprep.subr.mxu0 0.0
    %919 = vmatpush1.msra.mxu0 %v246
    %920 = vmatprep.subr.mxu0 0.0
    %921 = vmatpush1.msra.mxu0 %v243
    %922 = vmatprep.subr.mxu0 0.0
    %923 = vmatpush1.msra.mxu0 %v240
    %924 = vmatprep.subr.mxu0 0.0
    %925 = vmatpush2.msra.mxu0 0.0
    %926 = vmatprep.subr.mxu0 0.0
    %927 = vmatpush2.msra.mxu0 0.0
    %928 = vmatprep.subr.mxu0 0.0
    %929 = vmatpush2.msra.mxu0 0.0
    %930 = vmatprep.subr.mxu0 0.0
    %931 = vmatpush2.msra.mxu0 0.0
    %932 = vmatprep.subr.mxu0 0.0
    %933 = vmatpush2.msra.mxu0 0.0
    %934 = vmatprep.subr.mxu0 0.0
    %935 = vmatpush2.msra.mxu0 0.0
    %936 = vmatprep.subr.mxu0 0.0
    %937 = vmatpush2.msra.mxu0 0.0
    %938 = vmatprep.subr.mxu0 0.0
    %939 = vmatpush2.msra.mxu0 0.0
    %940 = vmatprep.subr.mxu0 0.0
    %941 = vmatpush2.msra.mxu0 0.0
    %942 = vmatprep.subr.mxu0 0.0
    %943 = vmatpush2.msra.mxu0 0.0
    %944 = vmatprep.subr.mxu0 0.0
    %945 = vmatpush2.msra.mxu0 0.0
    %946 = vmatprep.subr.mxu0 0.0
    %947 = vmatpush2.msra.mxu0 0.0
    %948 = vmatprep.subr.mxu0 0.0
    %949 = vmatpush2.msra.mxu0 0.0
    %950 = vmatprep.subr.mxu0 0.0
    %951 = vmatpush2.msra.mxu0 0.0
    %952 = vmatprep.subr.mxu0 0.0
    %953 = vmatpush2.msra.mxu0 0.0
    %954 = vmatprep.subr.mxu0 0.0
    %955 = vmatpush2.msra.mxu0 0.0
    %956 = vmatprep.mubr.f32.mxu0 0.0
    %957 = vmatmul.mubr.f32.gmra.mxu0 %v819
    %v958 = vpop.f32.mrf.mxu0
    %v959 = vadd.f32 %v299, %v958
    %v960 = vpop.f32.mrf.mxu0
    %961 = vdwg.mxu0
    %v963 = vrot.slane %v888, 2
    %v965 = vadd.f32 %v153, %v963
    %v966 = vxor.u32 %v965, 2147483648
    %v967 = vmul.f32 %v966, 1.442695
    %v968 = vpow.pop %v967
    %v969 = vadd.f32 %v968, 1.0
    %v970 = vrcp.pop %v969
    %v971 = vmul.f32 1.0, %v970
    %v973 = vrot.slane %v890, 2
    %v975 = vadd.f32 %v155, %v973
    %v976 = vxor.u32 %v975, 2147483648
    %v977 = vmul.f32 %v976, 1.442695
    %v978 = vpow.pop %v977
    %v979 = vadd.f32 %v978, 1.0
    %v980 = vrcp.pop %v979
    %v981 = vmul.f32 1.0, %v980
    %v983 = vrot.slane %v959, 2
    %v985 = vmul.f32 %v971, %v983
    %v986 = vadd.f32 %v230, %v985
    %v987 = vtanh.pop %v986
    %v988 = vsub.f32 1.0, %v981
    %v989 = vmul.f32 %v988, %v987
    %v990 = vrot.slane %v816, 6
    %v992 = vmul.f32 %v981, %v990
    %v993 = vadd.f32 %v989, %v992
    %994 = vst [vmem:[%s5] sm:$0xc0] %v993
    %v996 = vrot.slane %v993, 6
    %998 = vmatprep.subr.mxu0 %v284
    %999 = vmatpush1.msra.mxu0 %v283
    %1000 = vmatprep.subr.mxu0 %v281
    %1001 = vmatpush1.msra.mxu0 %v280
    %1002 = vmatprep.subr.mxu0 %v278
    %1003 = vmatpush1.msra.mxu0 %v277
    %1004 = vmatprep.subr.mxu0 %v275
    %1005 = vmatpush1.msra.mxu0 %v274
    %1006 = vmatprep.subr.mxu0 %v272
    %1007 = vmatpush1.msra.mxu0 %v271
    %1008 = vmatprep.subr.mxu0 %v269
    %1009 = vmatpush1.msra.mxu0 %v268
    %1010 = vmatprep.subr.mxu0 %v266
    %1011 = vmatpush1.msra.mxu0 %v265
    %1012 = vmatprep.subr.mxu0 %v263
    %1013 = vmatpush1.msra.mxu0 %v262
    %1014 = vmatprep.subr.mxu0 %v260
    %1015 = vmatpush1.msra.mxu0 %v259
    %1016 = vmatprep.subr.mxu0 %v257
    %1017 = vmatpush1.msra.mxu0 %v256
    %1018 = vmatprep.subr.mxu0 %v254
    %1019 = vmatpush1.msra.mxu0 %v253
    %1020 = vmatprep.subr.mxu0 %v251
    %1021 = vmatpush1.msra.mxu0 %v250
    %1022 = vmatprep.subr.mxu0 %v248
    %1023 = vmatpush1.msra.mxu0 %v247
    %1024 = vmatprep.subr.mxu0 %v245
    %1025 = vmatpush1.msra.mxu0 %v244
    %1026 = vmatprep.subr.mxu0 %v242
    %1027 = vmatpush1.msra.mxu0 %v241
    %1028 = vmatprep.subr.mxu0 %v239
    %1029 = vmatpush1.msra.mxu0 %v238
    %1030 = vmatprep.subr.mxu0 0.0
    %1031 = vmatpush2.msra.mxu0 0.0
    %1032 = vmatprep.subr.mxu0 0.0
    %1033 = vmatpush2.msra.mxu0 0.0
    %1034 = vmatprep.subr.mxu0 0.0
    %1035 = vmatpush2.msra.mxu0 0.0
    %1036 = vmatprep.subr.mxu0 0.0
    %1037 = vmatpush2.msra.mxu0 0.0
    %1038 = vmatprep.subr.mxu0 0.0
    %1039 = vmatpush2.msra.mxu0 0.0
    %1040 = vmatprep.subr.mxu0 0.0
    %1041 = vmatpush2.msra.mxu0 0.0
    %1042 = vmatprep.subr.mxu0 0.0
    %1043 = vmatpush2.msra.mxu0 0.0
    %1044 = vmatprep.subr.mxu0 0.0
    %1045 = vmatpush2.msra.mxu0 0.0
    %1046 = vmatprep.subr.mxu0 0.0
    %1047 = vmatpush2.msra.mxu0 0.0
    %1048 = vmatprep.subr.mxu0 0.0
    %1049 = vmatpush2.msra.mxu0 0.0
    %1050 = vmatprep.subr.mxu0 0.0
    %1051 = vmatpush2.msra.mxu0 0.0
    %1052 = vmatprep.subr.mxu0 0.0
    %1053 = vmatpush2.msra.mxu0 0.0
    %1054 = vmatprep.subr.mxu0 0.0
    %1055 = vmatpush2.msra.mxu0 0.0
    %1056 = vmatprep.subr.mxu0 0.0
    %1057 = vmatpush2.msra.mxu0 0.0
    %1058 = vmatprep.subr.mxu0 0.0
    %1059 = vmatpush2.msra.mxu0 0.0
    %1060 = vmatprep.subr.mxu0 0.0
    %1061 = vmatpush2.msra.mxu0 0.0
    %1062 = vmatprep.mubr.f32.mxu0 0.0
    %1063 = vmatmul.mubr.f32.gmra.mxu0 %v996
    %v1064 = vpop.f32.mrf.mxu0
    %v1065 = vadd.f32 %v291, %v1064
    %v1066 = vpop.f32.mrf.mxu0
    %v1067 = vadd.f32 %v295, %v1066
    %1068 = vdwg.mxu0
    %1069 = vmatprep.subr.mxu0 0.0
    %1070 = vmatpush1.msra.mxu0 %v285
    %1071 = vmatprep.subr.mxu0 0.0
    %1072 = vmatpush1.msra.mxu0 %v282
    %1073 = vmatprep.subr.mxu0 0.0
    %1074 = vmatpush1.msra.mxu0 %v279
    %1075 = vmatprep.subr.mxu0 0.0
    %1076 = vmatpush1.msra.mxu0 %v276
    %1077 = vmatprep.subr.mxu0 0.0
    %1078 = vmatpush1.msra.mxu0 %v273
    %1079 = vmatprep.subr.mxu0 0.0
    %1080 = vmatpush1.msra.mxu0 %v270
    %1081 = vmatprep.subr.mxu0 0.0
    %1082 = vmatpush1.msra.mxu0 %v267
    %1083 = vmatprep.subr.mxu0 0.0
    %1084 = vmatpush1.msra.mxu0 %v264
    %1085 = vmatprep.subr.mxu0 0.0
    %1086 = vmatpush1.msra.mxu0 %v261
    %1087 = vmatprep.subr.mxu0 0.0
    %1088 = vmatpush1.msra.mxu0 %v258
    %1089 = vmatprep.subr.mxu0 0.0
    %1090 = vmatpush1.msra.mxu0 %v255
    %1091 = vmatprep.subr.mxu0 0.0
    %1092 = vmatpush1.msra.mxu0 %v252
    %1093 = vmatprep.subr.mxu0 0.0
    %1094 = vmatpush1.msra.mxu0 %v249
    %1095 = vmatprep.subr.mxu0 0.0
    %1096 = vmatpush1.msra.mxu0 %v246
    %1097 = vmatprep.subr.mxu0 0.0
    %1098 = vmatpush1.msra.mxu0 %v243
    %1099 = vmatprep.subr.mxu0 0.0
    %1100 = vmatpush1.msra.mxu0 %v240
    %1101 = vmatprep.subr.mxu0 0.0
    %1102 = vmatpush2.msra.mxu0 0.0
    %1103 = vmatprep.subr.mxu0 0.0
    %1104 = vmatpush2.msra.mxu0 0.0
    %1105 = vmatprep.subr.mxu0 0.0
    %1106 = vmatpush2.msra.mxu0 0.0
    %1107 = vmatprep.subr.mxu0 0.0
    %1108 = vmatpush2.msra.mxu0 0.0
    %1109 = vmatprep.subr.mxu0 0.0
    %1110 = vmatpush2.msra.mxu0 0.0
    %1111 = vmatprep.subr.mxu0 0.0
    %1112 = vmatpush2.msra.mxu0 0.0
    %1113 = vmatprep.subr.mxu0 0.0
    %1114 = vmatpush2.msra.mxu0 0.0
    %1115 = vmatprep.subr.mxu0 0.0
    %1116 = vmatpush2.msra.mxu0 0.0
    %1117 = vmatprep.subr.mxu0 0.0
    %1118 = vmatpush2.msra.mxu0 0.0
    %1119 = vmatprep.subr.mxu0 0.0
    %1120 = vmatpush2.msra.mxu0 0.0
    %1121 = vmatprep.subr.mxu0 0.0
    %1122 = vmatpush2.msra.mxu0 0.0
    %1123 = vmatprep.subr.mxu0 0.0
    %1124 = vmatpush2.msra.mxu0 0.0
    %1125 = vmatprep.subr.mxu0 0.0
    %1126 = vmatpush2.msra.mxu0 0.0
    %1127 = vmatprep.subr.mxu0 0.0
    %1128 = vmatpush2.msra.mxu0 0.0
    %1129 = vmatprep.subr.mxu0 0.0
    %1130 = vmatpush2.msra.mxu0 0.0
    %1131 = vmatprep.subr.mxu0 0.0
    %1132 = vmatpush2.msra.mxu0 0.0
    %1133 = vmatprep.mubr.f32.mxu0 0.0
    %1134 = vmatmul.mubr.f32.gmra.mxu0 %v996
    %v1135 = vpop.f32.mrf.mxu0
    %v1136 = vadd.f32 %v299, %v1135
    %v1137 = vpop.f32.mrf.mxu0
    %1138 = vdwg.mxu0
    %v1139 = vadd.f32 %v159, %v1065
    %v1140 = vxor.u32 %v1139, 2147483648
    %v1141 = vmul.f32 %v1140, 1.442695
    %v1142 = vpow.pop %v1141
    %v1143 = vadd.f32 %v1142, 1.0
    %v1144 = vrcp.pop %v1143
    %v1145 = vmul.f32 1.0, %v1144
    %v1146 = vadd.f32 %v161, %v1067
    %v1147 = vxor.u32 %v1146, 2147483648
    %v1148 = vmul.f32 %v1147, 1.442695
    %v1149 = vpow.pop %v1148
    %v1150 = vadd.f32 %v1149, 1.0
    %v1151 = vrcp.pop %v1150
    %v1152 = vmul.f32 1.0, %v1151
    %v1153 = vmul.f32 %v1145, %v1136
    %v1154 = vadd.f32 %v235, %v1153
    %v1155 = vtanh.pop %v1154
    %v1156 = vsub.f32 1.0, %v1152
    %v1157 = vmul.f32 %v1156, %v1155
    %v1158 = vmul.f32 %v1152, %v996
    %v1159 = vadd.f32 %v1157, %v1158
    %1160 = vst [vmem:[%s5 + $0x8] sm:$0x3] %v1159
    %1161 = vmatprep.subr.mxu0 %v284
    %1162 = vmatpush1.msra.mxu0 %v283
    %1163 = vmatprep.subr.mxu0 %v281
    %1164 = vmatpush1.msra.mxu0 %v280
    %1165 = vmatprep.subr.mxu0 %v278
    %1166 = vmatpush1.msra.mxu0 %v277
    %1167 = vmatprep.subr.mxu0 %v275
    %1168 = vmatpush1.msra.mxu0 %v274
    %1169 = vmatprep.subr.mxu0 %v272
    %1170 = vmatpush1.msra.mxu0 %v271
    %1171 = vmatprep.subr.mxu0 %v269
    %1172 = vmatpush1.msra.mxu0 %v268
    %1173 = vmatprep.subr.mxu0 %v266
    %1174 = vmatpush1.msra.mxu0 %v265
    %1175 = vmatprep.subr.mxu0 %v263
    %1176 = vmatpush1.msra.mxu0 %v262
    %1177 = vmatprep.subr.mxu0 %v260
    %1178 = vmatpush1.msra.mxu0 %v259
    %1179 = vmatprep.subr.mxu0 %v257
    %1180 = vmatpush1.msra.mxu0 %v256
    %1181 = vmatprep.subr.mxu0 %v254
    %1182 = vmatpush1.msra.mxu0 %v253
    %1183 = vmatprep.subr.mxu0 %v251
    %1184 = vmatpush1.msra.mxu0 %v250
    %1185 = vmatprep.subr.mxu0 %v248
    %1186 = vmatpush1.msra.mxu0 %v247
    %1187 = vmatprep.subr.mxu0 %v245
    %1188 = vmatpush1.msra.mxu0 %v244
    %1189 = vmatprep.subr.mxu0 %v242
    %1190 = vmatpush1.msra.mxu0 %v241
    %1191 = vmatprep.subr.mxu0 %v239
    %1192 = vmatpush1.msra.mxu0 %v238
    %1193 = vmatprep.subr.mxu0 0.0
    %1194 = vmatpush2.msra.mxu0 0.0
    %1195 = vmatprep.subr.mxu0 0.0
    %1196 = vmatpush2.msra.mxu0 0.0
    %1197 = vmatprep.subr.mxu0 0.0
    %1198 = vmatpush2.msra.mxu0 0.0
    %1199 = vmatprep.subr.mxu0 0.0
    %1200 = vmatpush2.msra.mxu0 0.0
    %1201 = vmatprep.subr.mxu0 0.0
    %1202 = vmatpush2.msra.mxu0 0.0
    %1203 = vmatprep.subr.mxu0 0.0
    %1204 = vmatpush2.msra.mxu0 0.0
    %1205 = vmatprep.subr.mxu0 0.0
    %1206 = vmatpush2.msra.mxu0 0.0
    %1207 = vmatprep.subr.mxu0 0.0
    %1208 = vmatpush2.msra.mxu0 0.0
    %1209 = vmatprep.subr.mxu0 0.0
    %1210 = vmatpush2.msra.mxu0 0.0
    %1211 = vmatprep.subr.mxu0 0.0
    %1212 = vmatpush2.msra.mxu0 0.0
    %1213 = vmatprep.subr.mxu0 0.0
    %1214 = vmatpush2.msra.mxu0 0.0
    %1215 = vmatprep.subr.mxu0 0.0
    %1216 = vmatpush2.msra.mxu0 0.0
    %1217 = vmatprep.subr.mxu0 0.0
    %1218 = vmatpush2.msra.mxu0 0.0
    %1219 = vmatprep.subr.mxu0 0.0
    %1220 = vmatpush2.msra.mxu0 0.0
    %1221 = vmatprep.subr.mxu0 0.0
    %1222 = vmatpush2.msra.mxu0 0.0
    %1223 = vmatprep.subr.mxu0 0.0
    %1224 = vmatpush2.msra.mxu0 0.0
    %1225 = vmatprep.mubr.f32.mxu0 0.0
    %1226 = vmatmul.mubr.f32.gmra.mxu0 %v1159
    %v1227 = vpop.f32.mrf.mxu0
    %v1228 = vadd.f32 %v291, %v1227
    %v1229 = vpop.f32.mrf.mxu0
    %v1230 = vadd.f32 %v295, %v1229
    %1231 = vdwg.mxu0
    %1232 = vmatprep.subr.mxu0 0.0
    %1233 = vmatpush1.msra.mxu0 %v285
    %1234 = vmatprep.subr.mxu0 0.0
    %1235 = vmatpush1.msra.mxu0 %v282
    %1236 = vmatprep.subr.mxu0 0.0
    %1237 = vmatpush1.msra.mxu0 %v279
    %1238 = vmatprep.subr.mxu0 0.0
    %1239 = vmatpush1.msra.mxu0 %v276
    %1240 = vmatprep.subr.mxu0 0.0
    %1241 = vmatpush1.msra.mxu0 %v273
    %1242 = vmatprep.subr.mxu0 0.0
    %1243 = vmatpush1.msra.mxu0 %v270
    %1244 = vmatprep.subr.mxu0 0.0
    %1245 = vmatpush1.msra.mxu0 %v267
    %1246 = vmatprep.subr.mxu0 0.0
    %1247 = vmatpush1.msra.mxu0 %v264
    %1248 = vmatprep.subr.mxu0 0.0
    %1249 = vmatpush1.msra.mxu0 %v261
    %1250 = vmatprep.subr.mxu0 0.0
    %1251 = vmatpush1.msra.mxu0 %v258
    %1252 = vmatprep.subr.mxu0 0.0
    %1253 = vmatpush1.msra.mxu0 %v255
    %1254 = vmatprep.subr.mxu0 0.0
    %1255 = vmatpush1.msra.mxu0 %v252
    %1256 = vmatprep.subr.mxu0 0.0
    %1257 = vmatpush1.msra.mxu0 %v249
    %1258 = vmatprep.subr.mxu0 0.0
    %1259 = vmatpush1.msra.mxu0 %v246
    %1260 = vmatprep.subr.mxu0 0.0
    %1261 = vmatpush1.msra.mxu0 %v243
    %1262 = vmatprep.subr.mxu0 0.0
    %1263 = vmatpush1.msra.mxu0 %v240
    %1264 = vmatprep.subr.mxu0 0.0
    %1265 = vmatpush2.msra.mxu0 0.0
    %1266 = vmatprep.subr.mxu0 0.0
    %1267 = vmatpush2.msra.mxu0 0.0
    %1268 = vmatprep.subr.mxu0 0.0
    %1269 = vmatpush2.msra.mxu0 0.0
    %1270 = vmatprep.subr.mxu0 0.0
    %1271 = vmatpush2.msra.mxu0 0.0
    %1272 = vmatprep.subr.mxu0 0.0
    %1273 = vmatpush2.msra.mxu0 0.0
    %1274 = vmatprep.subr.mxu0 0.0
    %1275 = vmatpush2.msra.mxu0 0.0
    %1276 = vmatprep.subr.mxu0 0.0
    %1277 = vmatpush2.msra.mxu0 0.0
    %1278 = vmatprep.subr.mxu0 0.0
    %1279 = vmatpush2.msra.mxu0 0.0
    %1280 = vmatprep.subr.mxu0 0.0
    %1281 = vmatpush2.msra.mxu0 0.0
    %1282 = vmatprep.subr.mxu0 0.0
    %1283 = vmatpush2.msra.mxu0 0.0
    %1284 = vmatprep.subr.mxu0 0.0
    %1285 = vmatpush2.msra.mxu0 0.0
    %1286 = vmatprep.subr.mxu0 0.0
    %1287 = vmatpush2.msra.mxu0 0.0
    %1288 = vmatprep.subr.mxu0 0.0
    %1289 = vmatpush2.msra.mxu0 0.0
    %1290 = vmatprep.subr.mxu0 0.0
    %1291 = vmatpush2.msra.mxu0 0.0
    %1292 = vmatprep.subr.mxu0 0.0
    %1293 = vmatpush2.msra.mxu0 0.0
    %1294 = vmatprep.subr.mxu0 0.0
    %1295 = vmatpush2.msra.mxu0 0.0
    %1296 = vmatprep.mubr.f32.mxu0 0.0
    %1297 = vmatmul.mubr.f32.gmra.mxu0 %v1159
    %v1298 = vpop.f32.mrf.mxu0
    %v1299 = vadd.f32 %v299, %v1298
    %v1300 = vpop.f32.mrf.mxu0
    %1301 = vdwg.mxu0
    %v1303 = vrot.slane %v1228, 6
    %v1305 = vadd.f32 %v159, %v1303
    %v1306 = vxor.u32 %v1305, 2147483648
    %v1307 = vmul.f32 %v1306, 1.442695
    %v1308 = vpow.pop %v1307
    %v1309 = vadd.f32 %v1308, 1.0
    %v1310 = vrcp.pop %v1309
    %v1311 = vmul.f32 1.0, %v1310
    %v1313 = vrot.slane %v1230, 6
    %v1315 = vadd.f32 %v161, %v1313
    %v1316 = vxor.u32 %v1315, 2147483648
    %v1317 = vmul.f32 %v1316, 1.442695
    %v1318 = vpow.pop %v1317
    %v1319 = vadd.f32 %v1318, 1.0
    %v1320 = vrcp.pop %v1319
    %v1321 = vmul.f32 1.0, %v1320
    %v1323 = vrot.slane %v1299, 6
    %v1325 = vmul.f32 %v1311, %v1323
    %v1326 = vadd.f32 %v235, %v1325
    %v1327 = vtanh.pop %v1326
    %v1328 = vsub.f32 1.0, %v1321
    %v1329 = vmul.f32 %v1328, %v1327
    %v1331 = vrot.slane %v1159, 6
    %v1333 = vmul.f32 %v1321, %v1331
    %v1334 = vadd.f32 %v1329, %v1333
    %1335 = vst [vmem:[%s5 + $0x8] sm:$0xc] %v1334
    %v1337 = vrot.slane %v1334, 2
    %1339 = vmatprep.subr.mxu0 %v284
    %1340 = vmatpush1.msra.mxu0 %v283
    %1341 = vmatprep.subr.mxu0 %v281
    %1342 = vmatpush1.msra.mxu0 %v280
    %1343 = vmatprep.subr.mxu0 %v278
    %1344 = vmatpush1.msra.mxu0 %v277
    %1345 = vmatprep.subr.mxu0 %v275
    %1346 = vmatpush1.msra.mxu0 %v274
    %1347 = vmatprep.subr.mxu0 %v272
    %1348 = vmatpush1.msra.mxu0 %v271
    %1349 = vmatprep.subr.mxu0 %v269
    %1350 = vmatpush1.msra.mxu0 %v268
    %1351 = vmatprep.subr.mxu0 %v266
    %1352 = vmatpush1.msra.mxu0 %v265
    %1353 = vmatprep.subr.mxu0 %v263
    %1354 = vmatpush1.msra.mxu0 %v262
    %1355 = vmatprep.subr.mxu0 %v260
    %1356 = vmatpush1.msra.mxu0 %v259
    %1357 = vmatprep.subr.mxu0 %v257
    %1358 = vmatpush1.msra.mxu0 %v256
    %1359 = vmatprep.subr.mxu0 %v254
    %1360 = vmatpush1.msra.mxu0 %v253
    %1361 = vmatprep.subr.mxu0 %v251
    %1362 = vmatpush1.msra.mxu0 %v250
    %1363 = vmatprep.subr.mxu0 %v248
    %1364 = vmatpush1.msra.mxu0 %v247
    %1365 = vmatprep.subr.mxu0 %v245
    %1366 = vmatpush1.msra.mxu0 %v244
    %1367 = vmatprep.subr.mxu0 %v242
    %1368 = vmatpush1.msra.mxu0 %v241
    %1369 = vmatprep.subr.mxu0 %v239
    %1370 = vmatpush1.msra.mxu0 %v238
    %1371 = vmatprep.subr.mxu0 0.0
    %1372 = vmatpush2.msra.mxu0 0.0
    %1373 = vmatprep.subr.mxu0 0.0
    %1374 = vmatpush2.msra.mxu0 0.0
    %1375 = vmatprep.subr.mxu0 0.0
    %1376 = vmatpush2.msra.mxu0 0.0
    %1377 = vmatprep.subr.mxu0 0.0
    %1378 = vmatpush2.msra.mxu0 0.0
    %1379 = vmatprep.subr.mxu0 0.0
    %1380 = vmatpush2.msra.mxu0 0.0
    %1381 = vmatprep.subr.mxu0 0.0
    %1382 = vmatpush2.msra.mxu0 0.0
    %1383 = vmatprep.subr.mxu0 0.0
    %1384 = vmatpush2.msra.mxu0 0.0
    %1385 = vmatprep.subr.mxu0 0.0
    %1386 = vmatpush2.msra.mxu0 0.0
    %1387 = vmatprep.subr.mxu0 0.0
    %1388 = vmatpush2.msra.mxu0 0.0
    %1389 = vmatprep.subr.mxu0 0.0
    %1390 = vmatpush2.msra.mxu0 0.0
    %1391 = vmatprep.subr.mxu0 0.0
    %1392 = vmatpush2.msra.mxu0 0.0
    %1393 = vmatprep.subr.mxu0 0.0
    %1394 = vmatpush2.msra.mxu0 0.0
    %1395 = vmatprep.subr.mxu0 0.0
    %1396 = vmatpush2.msra.mxu0 0.0
    %1397 = vmatprep.subr.mxu0 0.0
    %1398 = vmatpush2.msra.mxu0 0.0
    %1399 = vmatprep.subr.mxu0 0.0
    %1400 = vmatpush2.msra.mxu0 0.0
    %1401 = vmatprep.subr.mxu0 0.0
    %1402 = vmatpush2.msra.mxu0 0.0
    %1403 = vmatprep.mubr.f32.mxu0 0.0
    %1404 = vmatmul.mubr.f32.gmra.mxu0 %v1337
    %v1405 = vpop.f32.mrf.mxu0
    %v1406 = vadd.f32 %v291, %v1405
    %v1407 = vpop.f32.mrf.mxu0
    %v1408 = vadd.f32 %v295, %v1407
    %1409 = vdwg.mxu0
    %1410 = vmatprep.subr.mxu0 0.0
    %1411 = vmatpush1.msra.mxu0 %v285
    %1412 = vmatprep.subr.mxu0 0.0
    %1413 = vmatpush1.msra.mxu0 %v282
    %1414 = vmatprep.subr.mxu0 0.0
    %1415 = vmatpush1.msra.mxu0 %v279
    %1416 = vmatprep.subr.mxu0 0.0
    %1417 = vmatpush1.msra.mxu0 %v276
    %1418 = vmatprep.subr.mxu0 0.0
    %1419 = vmatpush1.msra.mxu0 %v273
    %1420 = vmatprep.subr.mxu0 0.0
    %1421 = vmatpush1.msra.mxu0 %v270
    %1422 = vmatprep.subr.mxu0 0.0
    %1423 = vmatpush1.msra.mxu0 %v267
    %1424 = vmatprep.subr.mxu0 0.0
    %1425 = vmatpush1.msra.mxu0 %v264
    %1426 = vmatprep.subr.mxu0 0.0
    %1427 = vmatpush1.msra.mxu0 %v261
    %1428 = vmatprep.subr.mxu0 0.0
    %1429 = vmatpush1.msra.mxu0 %v258
    %1430 = vmatprep.subr.mxu0 0.0
    %1431 = vmatpush1.msra.mxu0 %v255
    %1432 = vmatprep.subr.mxu0 0.0
    %1433 = vmatpush1.msra.mxu0 %v252
    %1434 = vmatprep.subr.mxu0 0.0
    %1435 = vmatpush1.msra.mxu0 %v249
    %1436 = vmatprep.subr.mxu0 0.0
    %1437 = vmatpush1.msra.mxu0 %v246
    %1438 = vmatprep.subr.mxu0 0.0
    %1439 = vmatpush1.msra.mxu0 %v243
    %1440 = vmatprep.subr.mxu0 0.0
    %1441 = vmatpush1.msra.mxu0 %v240
    %1442 = vmatprep.subr.mxu0 0.0
    %1443 = vmatpush2.msra.mxu0 0.0
    %1444 = vmatprep.subr.mxu0 0.0
    %1445 = vmatpush2.msra.mxu0 0.0
    %1446 = vmatprep.subr.mxu0 0.0
    %1447 = vmatpush2.msra.mxu0 0.0
    %1448 = vmatprep.subr.mxu0 0.0
    %1449 = vmatpush2.msra.mxu0 0.0
    %1450 = vmatprep.subr.mxu0 0.0
    %1451 = vmatpush2.msra.mxu0 0.0
    %1452 = vmatprep.subr.mxu0 0.0
    %1453 = vmatpush2.msra.mxu0 0.0
    %1454 = vmatprep.subr.mxu0 0.0
    %1455 = vmatpush2.msra.mxu0 0.0
    %1456 = vmatprep.subr.mxu0 0.0
    %1457 = vmatpush2.msra.mxu0 0.0
    %1458 = vmatprep.subr.mxu0 0.0
    %1459 = vmatpush2.msra.mxu0 0.0
    %1460 = vmatprep.subr.mxu0 0.0
    %1461 = vmatpush2.msra.mxu0 0.0
    %1462 = vmatprep.subr.mxu0 0.0
    %1463 = vmatpush2.msra.mxu0 0.0
    %1464 = vmatprep.subr.mxu0 0.0
    %1465 = vmatpush2.msra.mxu0 0.0
    %1466 = vmatprep.subr.mxu0 0.0
    %1467 = vmatpush2.msra.mxu0 0.0
    %1468 = vmatprep.subr.mxu0 0.0
    %1469 = vmatpush2.msra.mxu0 0.0
    %1470 = vmatprep.subr.mxu0 0.0
    %1471 = vmatpush2.msra.mxu0 0.0
    %1472 = vmatprep.subr.mxu0 0.0
    %1473 = vmatpush2.msra.mxu0 0.0
    %1474 = vmatprep.mubr.f32.mxu0 0.0
    %1475 = vmatmul.mubr.f32.gmra.mxu0 %v1337
    %v1476 = vpop.f32.mrf.mxu0
    %v1477 = vadd.f32 %v299, %v1476
    %v1478 = vpop.f32.mrf.mxu0
    %1479 = vdwg.mxu0
    %v1481 = vrot.slane %v1406, 4
    %v1483 = vadd.f32 %v159, %v1481
    %v1484 = vxor.u32 %v1483, 2147483648
    %v1485 = vmul.f32 %v1484, 1.442695
    %v1486 = vpow.pop %v1485
    %v1487 = vadd.f32 %v1486, 1.0
    %v1488 = vrcp.pop %v1487
    %v1489 = vmul.f32 1.0, %v1488
    %v1491 = vrot.slane %v1408, 4
    %v1493 = vadd.f32 %v161, %v1491
    %v1494 = vxor.u32 %v1493, 2147483648
    %v1495 = vmul.f32 %v1494, 1.442695
    %v1496 = vpow.pop %v1495
    %v1497 = vadd.f32 %v1496, 1.0
    %v1498 = vrcp.pop %v1497
    %v1499 = vmul.f32 1.0, %v1498
    %v1501 = vrot.slane %v1477, 4
    %v1503 = vmul.f32 %v1489, %v1501
    %v1504 = vadd.f32 %v235, %v1503
    %v1505 = vtanh.pop %v1504
    %v1506 = vsub.f32 1.0, %v1499
    %v1507 = vmul.f32 %v1506, %v1505
    %v1508 = vrot.slane %v1334, 6
    %v1510 = vmul.f32 %v1499, %v1508
    %v1511 = vadd.f32 %v1507, %v1510
    %1512 = vst [vmem:[%s5 + $0x8] sm:$0x30] %v1511
    %v1514 = vrot.slane %v1511, 4
    %1516 = vmatprep.subr.mxu0 %v284
    %1517 = vmatpush1.msra.mxu0 %v283
    %1518 = vmatprep.subr.mxu0 %v281
    %1519 = vmatpush1.msra.mxu0 %v280
    %1520 = vmatprep.subr.mxu0 %v278
    %1521 = vmatpush1.msra.mxu0 %v277
    %1522 = vmatprep.subr.mxu0 %v275
    %1523 = vmatpush1.msra.mxu0 %v274
    %1524 = vmatprep.subr.mxu0 %v272
    %1525 = vmatpush1.msra.mxu0 %v271
    %1526 = vmatprep.subr.mxu0 %v269
    %1527 = vmatpush1.msra.mxu0 %v268
    %1528 = vmatprep.subr.mxu0 %v266
    %1529 = vmatpush1.msra.mxu0 %v265
    %1530 = vmatprep.subr.mxu0 %v263
    %1531 = vmatpush1.msra.mxu0 %v262
    %1532 = vmatprep.subr.mxu0 %v260
    %1533 = vmatpush1.msra.mxu0 %v259
    %1534 = vmatprep.subr.mxu0 %v257
    %1535 = vmatpush1.msra.mxu0 %v256
    %1536 = vmatprep.subr.mxu0 %v254
    %1537 = vmatpush1.msra.mxu0 %v253
    %1538 = vmatprep.subr.mxu0 %v251
    %1539 = vmatpush1.msra.mxu0 %v250
    %1540 = vmatprep.subr.mxu0 %v248
    %1541 = vmatpush1.msra.mxu0 %v247
    %1542 = vmatprep.subr.mxu0 %v245
    %1543 = vmatpush1.msra.mxu0 %v244
    %1544 = vmatprep.subr.mxu0 %v242
    %1545 = vmatpush1.msra.mxu0 %v241
    %1546 = vmatprep.subr.mxu0 %v239
    %1547 = vmatpush1.msra.mxu0 %v238
    %1548 = vmatprep.subr.mxu0 0.0
    %1549 = vmatpush2.msra.mxu0 0.0
    %1550 = vmatprep.subr.mxu0 0.0
    %1551 = vmatpush2.msra.mxu0 0.0
    %1552 = vmatprep.subr.mxu0 0.0
    %1553 = vmatpush2.msra.mxu0 0.0
    %1554 = vmatprep.subr.mxu0 0.0
    %1555 = vmatpush2.msra.mxu0 0.0
    %1556 = vmatprep.subr.mxu0 0.0
    %1557 = vmatpush2.msra.mxu0 0.0
    %1558 = vmatprep.subr.mxu0 0.0
    %1559 = vmatpush2.msra.mxu0 0.0
    %1560 = vmatprep.subr.mxu0 0.0
    %1561 = vmatpush2.msra.mxu0 0.0
    %1562 = vmatprep.subr.mxu0 0.0
    %1563 = vmatpush2.msra.mxu0 0.0
    %1564 = vmatprep.subr.mxu0 0.0
    %1565 = vmatpush2.msra.mxu0 0.0
    %1566 = vmatprep.subr.mxu0 0.0
    %1567 = vmatpush2.msra.mxu0 0.0
    %1568 = vmatprep.subr.mxu0 0.0
    %1569 = vmatpush2.msra.mxu0 0.0
    %1570 = vmatprep.subr.mxu0 0.0
    %1571 = vmatpush2.msra.mxu0 0.0
    %1572 = vmatprep.subr.mxu0 0.0
    %1573 = vmatpush2.msra.mxu0 0.0
    %1574 = vmatprep.subr.mxu0 0.0
    %1575 = vmatpush2.msra.mxu0 0.0
    %1576 = vmatprep.subr.mxu0 0.0
    %1577 = vmatpush2.msra.mxu0 0.0
    %1578 = vmatprep.subr.mxu0 0.0
    %1579 = vmatpush2.msra.mxu0 0.0
    %1580 = vmatprep.mubr.f32.mxu0 0.0
    %1581 = vmatmul.mubr.f32.gmra.mxu0 %v1514
    %v1582 = vpop.f32.mrf.mxu0
    %v1583 = vadd.f32 %v291, %v1582
    %v1584 = vpop.f32.mrf.mxu0
    %v1585 = vadd.f32 %v295, %v1584
    %1586 = vdwg.mxu0
    %1587 = vmatprep.subr.mxu0 0.0
    %1588 = vmatpush1.msra.mxu0 %v285
    %1589 = vmatprep.subr.mxu0 0.0
    %1590 = vmatpush1.msra.mxu0 %v282
    %1591 = vmatprep.subr.mxu0 0.0
    %1592 = vmatpush1.msra.mxu0 %v279
    %1593 = vmatprep.subr.mxu0 0.0
    %1594 = vmatpush1.msra.mxu0 %v276
    %1595 = vmatprep.subr.mxu0 0.0
    %1596 = vmatpush1.msra.mxu0 %v273
    %1597 = vmatprep.subr.mxu0 0.0
    %1598 = vmatpush1.msra.mxu0 %v270
    %1599 = vmatprep.subr.mxu0 0.0
    %1600 = vmatpush1.msra.mxu0 %v267
    %1601 = vmatprep.subr.mxu0 0.0
    %1602 = vmatpush1.msra.mxu0 %v264
    %1603 = vmatprep.subr.mxu0 0.0
    %1604 = vmatpush1.msra.mxu0 %v261
    %1605 = vmatprep.subr.mxu0 0.0
    %1606 = vmatpush1.msra.mxu0 %v258
    %1607 = vmatprep.subr.mxu0 0.0
    %1608 = vmatpush1.msra.mxu0 %v255
    %1609 = vmatprep.subr.mxu0 0.0
    %1610 = vmatpush1.msra.mxu0 %v252
    %1611 = vmatprep.subr.mxu0 0.0
    %1612 = vmatpush1.msra.mxu0 %v249
    %1613 = vmatprep.subr.mxu0 0.0
    %1614 = vmatpush1.msra.mxu0 %v246
    %1615 = vmatprep.subr.mxu0 0.0
    %1616 = vmatpush1.msra.mxu0 %v243
    %1617 = vmatprep.subr.mxu0 0.0
    %1618 = vmatpush1.msra.mxu0 %v240
    %1619 = vmatprep.subr.mxu0 0.0
    %1620 = vmatpush2.msra.mxu0 0.0
    %1621 = vmatprep.subr.mxu0 0.0
    %1622 = vmatpush2.msra.mxu0 0.0
    %1623 = vmatprep.subr.mxu0 0.0
    %1624 = vmatpush2.msra.mxu0 0.0
    %1625 = vmatprep.subr.mxu0 0.0
    %1626 = vmatpush2.msra.mxu0 0.0
    %1627 = vmatprep.subr.mxu0 0.0
    %1628 = vmatpush2.msra.mxu0 0.0
    %1629 = vmatprep.subr.mxu0 0.0
    %1630 = vmatpush2.msra.mxu0 0.0
    %1631 = vmatprep.subr.mxu0 0.0
    %1632 = vmatpush2.msra.mxu0 0.0
    %1633 = vmatprep.subr.mxu0 0.0
    %1634 = vmatpush2.msra.mxu0 0.0
    %1635 = vmatprep.subr.mxu0 0.0
    %1636 = vmatpush2.msra.mxu0 0.0
    %1637 = vmatprep.subr.mxu0 0.0
    %1638 = vmatpush2.msra.mxu0 0.0
    %1639 = vmatprep.subr.mxu0 0.0
    %1640 = vmatpush2.msra.mxu0 0.0
    %1641 = vmatprep.subr.mxu0 0.0
    %1642 = vmatpush2.msra.mxu0 0.0
    %1643 = vmatprep.subr.mxu0 0.0
    %1644 = vmatpush2.msra.mxu0 0.0
    %1645 = vmatprep.subr.mxu0 0.0
    %1646 = vmatpush2.msra.mxu0 0.0
    %1647 = vmatprep.subr.mxu0 0.0
    %1648 = vmatpush2.msra.mxu0 0.0
    %1649 = vmatprep.subr.mxu0 0.0
    %1650 = vmatpush2.msra.mxu0 0.0
    %1651 = vmatprep.mubr.f32.mxu0 0.0
    %1652 = vmatmul.mubr.f32.gmra.mxu0 %v1514
    %v1653 = vpop.f32.mrf.mxu0
    %v1654 = vadd.f32 %v299, %v1653
    %v1655 = vpop.f32.mrf.mxu0
    %1656 = vdwg.mxu0
    %v1658 = vrot.slane %v1583, 2
    %v1660 = vadd.f32 %v159, %v1658
    %v1661 = vxor.u32 %v1660, 2147483648
    %v1662 = vmul.f32 %v1661, 1.442695
    %v1663 = vpow.pop %v1662
    %v1664 = vadd.f32 %v1663, 1.0
    %v1665 = vrcp.pop %v1664
    %v1666 = vmul.f32 1.0, %v1665
    %v1668 = vrot.slane %v1585, 2
    %v1670 = vadd.f32 %v161, %v1668
    %v1671 = vxor.u32 %v1670, 2147483648
    %v1672 = vmul.f32 %v1671, 1.442695
    %v1673 = vpow.pop %v1672
    %v1674 = vadd.f32 %v1673, 1.0
    %v1675 = vrcp.pop %v1674
    %v1676 = vmul.f32 1.0, %v1675
    %v1678 = vrot.slane %v1654, 2
    %v1680 = vmul.f32 %v1666, %v1678
    %v1681 = vadd.f32 %v235, %v1680
    %v1682 = vtanh.pop %v1681
    %v1683 = vsub.f32 1.0, %v1676
    %v1684 = vmul.f32 %v1683, %v1682
    %v1685 = vrot.slane %v1511, 6
    %v1687 = vmul.f32 %v1676, %v1685
    %v1688 = vadd.f32 %v1684, %v1687
    %1689 = vst [vmem:[%s5 + $0x8] sm:$0xc0] %v1688
    // Predicated region
    $region30: #{_gru_apply.1} parent=1 // pred_check
      _
    $region31: #{_gru_apply.1} parent=1 // pred_check_branch
      %1691 = sbr.rel (0) target = $region33
    $region32: #{_gru_apply.1} parent=1 // pred_region
      _
    $region33: #{_gru_apply.1} parent=1 // pred_fallthru
      _
    // Predicated region
    $region34: #{_gru_apply.1} parent=1 // pred_check
      _
    $region35: #{_gru_apply.1} parent=1 // pred_check_branch
      %1693 = sbr.rel (0) target = $region37
    $region36: #{_gru_apply.1} parent=1 // pred_region
      _
    $region37: #{_gru_apply.1} parent=1 // pred_fallthru
      _
    %1694 = vsyncpa [#allocation3], 1
    %1695 = vsyncpa [#allocation5], 1

</llo_original>
